<compile_context>
chip_gen: v5e
topology: v5e:2x2
jax: 0.10.0
libtpu: 0.0.40
codegen_flags: <defaults>
</compile_context>

<pallas_src>
import math

import numpy as np
import jax
import jax.numpy as jnp
from jax import lax
from jax.experimental import pallas as pl
from jax.experimental.pallas import tpu as pltpu

NEG_SLOPE = 0.2
BN_EPS = 1e-5


# ------------------------------ tiling helpers ----------------------------- #

def _round_up(x, m):
    return (x + m - 1) // m * m


def _choose_tm(m):
    """Row tile: multiple of 8, <=512, no padding for the shapes we see."""
    m8 = _round_up(m, 8)
    if m8 <= 256:
        return m8                       # single row tile, zero padding
    for tm in (512, 256):
        if m8 % tm == 0 and m8 // tm >= 2:
            return tm                   # >=2 tiles -> 'parallel' axis feeds both TCs
    return 128


def _choose_tk(k):
    # Keep the whole K resident unless it is large (v7x VMEM budget); otherwise
    # tile the reduction axis and accumulate into the f32 VMEM scratch.
    return k if k <= 1024 else 512


# ------------------------------ Pallas kernels ----------------------------- #

def _matmul_bias_act_kernel(x_ref, w_ref, b_ref, o_ref, acc_ref):
    """o = LeakyReLU(x @ w + b); K-tiled accumulation in f32 scratch."""
    k = pl.program_id(1)

    @pl.when(k == 0)
    def _():
        acc_ref[...] = jnp.zeros_like(acc_ref)

    acc_ref[...] += jnp.dot(x_ref[...], w_ref[...],
                            preferred_element_type=jnp.float32)

    @pl.when(k == pl.num_programs(1) - 1)
    def _():
        y = acc_ref[...] + b_ref[...]
        o_ref[...] = jnp.where(y >= 0, y, NEG_SLOPE * y).astype(o_ref.dtype)


def _matmul_stats_kernel(x_ref, w_ref, o_ref, sum_ref, ssq_ref, acc_ref):
    """o = x @ w (no bias); also emits per-tile per-channel sum / sum-of-squares
    so the BatchNorm statistics never re-read the conv output from HBM."""
    k = pl.program_id(1)

    @pl.when(k == 0)
    def _():
        acc_ref[...] = jnp.zeros_like(acc_ref)

    acc_ref[...] += jnp.dot(x_ref[...], w_ref[...],
                            preferred_element_type=jnp.float32)

    @pl.when(k == pl.num_programs(1) - 1)
    def _():
        acc = acc_ref[...]
        o_ref[...] = acc.astype(o_ref.dtype)
        sum_ref[...] = jnp.sum(acc, axis=0, keepdims=True)[None]          # (1,1,N)
        ssq_ref[...] = jnp.sum(acc * acc, axis=0, keepdims=True)[None]    # (1,1,N)


def _affine_act_kernel(x_ref, scale_ref, shift_ref, o_ref):
    """o = LeakyReLU(x * scale + shift), per-channel scale/shift (BN affine)."""
    y = x_ref[...] * scale_ref[...] + shift_ref[...]
    o_ref[...] = jnp.where(y >= 0, y, NEG_SLOPE * y).astype(o_ref.dtype)


# ------------------------------ kernel wrappers ----------------------------- #

def conv_matmul_bias_act(patches, w, bias, out_dtype):
    """LeakyReLU(patches @ w + bias) via Pallas (in_conv)."""
    m, k = patches.shape
    k2, n = w.shape
    assert k == k2
    tm, tk = _choose_tm(m), _choose_tk(k)
    mp, kp = _round_up(m, tm), _round_up(k, tk)
    xp = jnp.pad(patches, ((0, mp - m), (0, kp - k))) if (mp != m or kp != k) else patches
    wp = jnp.pad(w, ((0, kp - k), (0, 0))) if kp != k else w

    out = pl.pallas_call(
        _matmul_bias_act_kernel,
        out_shape=jax.ShapeDtypeStruct((mp, n), out_dtype),
        grid=(mp // tm, kp // tk),
        in_specs=[
            pl.BlockSpec((tm, tk), lambda i, kk: (i, kk)),
            pl.BlockSpec((tk, n), lambda i, kk: (kk, 0)),
            pl.BlockSpec((1, n), lambda i, kk: (0, 0)),
        ],
        out_specs=pl.BlockSpec((tm, n), lambda i, kk: (i, 0)),
        scratch_shapes=[pltpu.VMEM((tm, n), jnp.float32)],
        compiler_params=pltpu.CompilerParams(
            dimension_semantics=("parallel", "arbitrary")),
    )(xp, wp, bias.reshape(1, n).astype(jnp.float32))
    return out[:m]


def conv_matmul_stats(patches, w):
    """conv = patches @ w (no bias) plus fused per-channel batch statistics.

    Returns (conv_f32[m, n], mean[n], biased_var[n]).  Zero-padded rows/cols
    contribute exact zeros, so dividing by the true row count is correct.
    """
    m, k = patches.shape
    _, n = w.shape
    tm, tk = _choose_tm(m), _choose_tk(k)
    mp, kp = _round_up(m, tm), _round_up(k, tk)
    xp = jnp.pad(patches, ((0, mp - m), (0, kp - k))) if (mp != m or kp != k) else patches
    wp = jnp.pad(w, ((0, kp - k), (0, 0))) if kp != k else w
    gm, gk = mp // tm, kp // tk

    conv, psum, pssq = pl.pallas_call(
        _matmul_stats_kernel,
        out_shape=(
            jax.ShapeDtypeStruct((mp, n), jnp.float32),
            jax.ShapeDtypeStruct((gm, 1, n), jnp.float32),
            jax.ShapeDtypeStruct((gm, 1, n), jnp.float32),
        ),
        grid=(gm, gk),
        in_specs=[
            pl.BlockSpec((tm, tk), lambda i, kk: (i, kk)),
            pl.BlockSpec((tk, n), lambda i, kk: (kk, 0)),
        ],
        out_specs=(
            pl.BlockSpec((tm, n), lambda i, kk: (i, 0)),
            pl.BlockSpec((1, 1, n), lambda i, kk: (i, 0, 0)),
            pl.BlockSpec((1, 1, n), lambda i, kk: (i, 0, 0)),
        ),
        scratch_shapes=[pltpu.VMEM((tm, n), jnp.float32)],
        compiler_params=pltpu.CompilerParams(
            dimension_semantics=("parallel", "arbitrary")),
    )(xp, wp)

    total = jnp.sum(psum[:, 0, :], axis=0)
    total_sq = jnp.sum(pssq[:, 0, :], axis=0)
    mean = total / m
    var = total_sq / m - mean * mean          # biased, like PyTorch training BN
    return conv[:m], mean, var


def fused_affine_act(x, scale, shift, out_dtype):
    """LeakyReLU(x * scale + shift) elementwise, per-column scale/shift."""
    m, n = x.shape
    tm = _choose_tm(m)
    mp = _round_up(m, tm)
    xp = jnp.pad(x, ((0, mp - m), (0, 0))) if mp != m else x
    out = pl.pallas_call(
        _affine_act_kernel,
        out_shape=jax.ShapeDtypeStruct((mp, n), out_dtype),
        grid=(mp // tm,),
        in_specs=[
            pl.BlockSpec((tm, n), lambda i: (i, 0)),
            pl.BlockSpec((1, n), lambda i: (0, 0)),
            pl.BlockSpec((1, n), lambda i: (0, 0)),
        ],
        out_specs=pl.BlockSpec((tm, n), lambda i: (i, 0)),
        compiler_params=pltpu.CompilerParams(dimension_semantics=("parallel",)),
    )(xp, scale.reshape(1, n).astype(jnp.float32),
      shift.reshape(1, n).astype(jnp.float32))
    return out[:m]


# -------------------------------- JAX glue ---------------------------------- #

def im2col_nhwc_4x4_s2_p1(x):
    """Conv2d(k=4, s=2, p=1) patches on NHWC: (N,H,W,C) -> ((N*Ho*Wo), 16*C).

    Column order is (kh, kw, c) so it lines up with conv weights permuted from
    OIHW to (kh, kw, c_in, c_out) and flattened.
    """
    n, h, w, c = x.shape
    ho, wo = h // 2, w // 2
    xp = jnp.pad(x, ((0, 0), (1, 1), (1, 1), (0, 0)))
    taps = []
    for kh in range(4):
        for kw in range(4):
            taps.append(xp[:, kh:kh + 2 * ho:2, kw:kw + 2 * wo:2, :])   # (N,Ho,Wo,C)
    pat = jnp.stack(taps, axis=3)                                        # (N,Ho,Wo,16,C)
    return pat.reshape(n * ho * wo, 16 * c), (n, ho, wo)


def init_encoder_params(key, in_ch, base_ch, out_dim=1, image_res=64):
    num_layers = max(math.ceil(math.log(image_res, 2)) - 3, 3)
    spatial = image_res // 2 ** (num_layers + 1)

    keys = iter(jax.random.split(key, 3 + num_layers))
    params = {
        "in_conv_w": 0.1 * jax.random.normal(next(keys), (base_ch, in_ch, 4, 4), jnp.float32),
        "in_conv_b": 0.1 * jax.random.normal(next(keys), (base_ch,), jnp.float32),
        "layers": [],
    }
    for i in range(num_layers):
        ci, co = base_ch * 2 ** i, base_ch * 2 ** (i + 1)
        params["layers"].append({
            "w": 0.1 * jax.random.normal(next(keys), (co, ci, 4, 4), jnp.float32),
            "gamma": jnp.ones((co,), jnp.float32),
            "beta": jnp.zeros((co,), jnp.float32),
        })
    fc_in = base_ch * 2 ** num_layers * spatial ** 2
    kw, kb = jax.random.split(next(keys))
    params["fc_w"] = 0.1 * jax.random.normal(kw, (out_dim, fc_in), jnp.float32)
    params["fc_b"] = 0.1 * jax.random.normal(kb, (out_dim,), jnp.float32)
    return params, num_layers


def encoder_forward(params, x_nchw, use_bf16=True):
    cdt = jnp.bfloat16 if use_bf16 else jnp.float32

    def conv_w(w):                                  # OIHW -> (kh*kw*ci, co), done once
        co = w.shape[0]
        return jnp.transpose(w, (2, 3, 1, 0)).reshape(-1, co).astype(cdt)

    # NHWC end-to-end; only the input and the final flatten touch NCHW.
    act = jnp.transpose(x_nchw, (0, 2, 3, 1)).astype(cdt)

    # in_conv: Conv2d(bias=True) + LeakyReLU fused into one matmul kernel.
    patches, (n, ho, wo) = im2col_nhwc_4x4_s2_p1(act)
    w = conv_w(params["in_conv_w"])
    act = conv_matmul_bias_act(patches, w, params["in_conv_b"],
                               out_dtype=cdt).reshape(n, ho, wo, w.shape[1])

    # conv (no bias) -> BatchNorm2d (fused batch stats) -> LeakyReLU
    for lp in params["layers"]:
        patches, (n, ho, wo) = im2col_nhwc_4x4_s2_p1(act)
        w = conv_w(lp["w"])
        conv, mean, var = conv_matmul_stats(patches, w)
        scale = lp["gamma"] / jnp.sqrt(var + BN_EPS)
        shift = lp["beta"] - mean * scale
        act = fused_affine_act(conv, scale, shift,
                               out_dtype=cdt).reshape(n, ho, wo, w.shape[1])

    # Flatten like PyTorch (NCHW order). The Linear has out_dim=1 -> lane-sparse
    # on the MXU, so it stays on the XLA/VPU path in f32 (tiny).
    flat = jnp.transpose(act, (0, 3, 1, 2)).reshape(act.shape[0], -1).astype(jnp.float32)
    return flat @ params["fc_w"].T + params["fc_b"]


# ------------------------ pure-JAX reference (check) ------------------------ #

def reference_forward(params, x):
    def conv(x, w, b=None):
        y = lax.conv_general_dilated(x, w, (2, 2), ((1, 1), (1, 1)),
                                     dimension_numbers=("NCHW", "OIHW", "NCHW"))
        return y if b is None else y + b[None, :, None, None]

    def lrelu(v):
        return jnp.where(v >= 0, v, NEG_SLOPE * v)

    out = lrelu(conv(x, params["in_conv_w"], params["in_conv_b"]))
    for lp in params["layers"]:
        c = conv(out, lp["w"])
        mean = jnp.mean(c, axis=(0, 2, 3), keepdims=True)
        var = jnp.mean((c - mean) ** 2, axis=(0, 2, 3), keepdims=True)
        cn = (c - mean) / jnp.sqrt(var + BN_EPS)
        cn = cn * lp["gamma"][None, :, None, None] + lp["beta"][None, :, None, None]
        out = lrelu(cn)
    flat = out.reshape(out.shape[0], -1)
    return flat @ params["fc_w"].T + params["fc_b"]


# ----------------------------------- main ----------------------------------- #

if __name__ == "__main__":
    key = jax.random.PRNGKey(0)
    kp, kx = jax.random.split(key)

    in_ch, base_ch, out_dim, image_res, batch = 3, 8, 1, 32, 2
    params, num_layers = init_encoder_params(kp, in_ch, base_ch, out_dim, image_res)
    x = jax.random.normal(kx, (batch, in_ch, image_res, image_res), jnp.float32)

    fwd = jax.jit(encoder_forward, static_argnames=("use_bf16",))
    ref = jax.block_until_ready(reference_forward(params, x))

    # Exact-semantics check: f32 MXU inputs vs. pure-JAX reference (tight).
    out_f32 = jax.block_until_ready(fwd(params, x, use_bf16=False))
    assert out_f32.shape == (batch, out_dim), out_f32.shape
    np.testing.assert_allclose(np.asarray(out_f32), np.asarray(ref), rtol=1e-3, atol=1e-3)

    # Fast path (default): bf16 MXU inputs, f32 accumulation / BN stats (loose sanity).
    out = jax.block_until_ready(fwd(params, x, use_bf16=True))
    assert out.shape == (batch, out_dim), out.shape
    np.testing.assert_allclose(np.asarray(out), np.asarray(ref), rtol=5e-2, atol=5e-2)

    print("KERNEL_OK")
</pallas_src>

<mosaic_0001>
module attributes {stable_mosaic.version = 11 : i64} {
  func.func @_matmul_bias_act_kernel(%arg0: i32, %arg1: i32, %arg2: memref<256x48xf32, #tpu.memory_space<vmem>>, %arg3: memref<48x8xf32, #tpu.memory_space<vmem>>, %arg4: memref<1x8xf32, #tpu.memory_space<vmem>>, %arg5: memref<256x8xf32, #tpu.memory_space<vmem>>, %arg6: memref<256x8xf32, #tpu.memory_space<vmem>>) attributes {dimension_semantics = [#tpu.dimension_semantics<parallel>, #tpu.dimension_semantics<arbitrary>], iteration_bounds = array<i64: 2, 1>, scalar_prefetch = 0 : i64, scratch_operands = 1 : i64, tpu.core_type = #tpu.core_type<tc>, window_params = [{transform_indices = @transform_0, window_bounds = array<i64: 256, 48>}, {transform_indices = @transform_1, window_bounds = array<i64: 48, 8>}, {pipeline_mode = #tpu.pipeline_mode<synchronous>, transform_indices = @transform_2, window_bounds = array<i64: 1, 8>}, {transform_indices = @transform_3, window_bounds = array<i64: 256, 8>}]} {
    %c0_i32 = arith.constant 0 : i32
    %0 = arith.cmpi eq, %arg1, %c0_i32 : i32
    %1 = arith.extui %0 : i1 to i32
    %c0_i32_0 = arith.constant 0 : i32
    %2 = arith.cmpi ne, %1, %c0_i32_0 : i32
    scf.if %2 {
      %cst_10 = arith.constant 0.000000e+00 : f32
      %12 = vector.broadcast %cst_10 : f32 to vector<256x8xf32>
      %c0_11 = arith.constant 0 : index
      %c0_12 = arith.constant 0 : index
      %13 = vector.load %arg6[%c0_11, %c0_12] : memref<256x8xf32, #tpu.memory_space<vmem>>, vector<256x8xf32>
      tpu.vector_store %arg6[%c0_11, %c0_12], %12 {strides = array<i32>} : memref<256x8xf32, #tpu.memory_space<vmem>>, vector<256x8xf32>,
    } else {
    }
    %c0 = arith.constant 0 : index
    %c0_1 = arith.constant 0 : index
    %3 = vector.load %arg6[%c0, %c0_1] : memref<256x8xf32, #tpu.memory_space<vmem>>, vector<256x8xf32>
    %c0_2 = arith.constant 0 : index
    %c0_3 = arith.constant 0 : index
    %4 = vector.load %arg2[%c0_2, %c0_3] : memref<256x48xf32, #tpu.memory_space<vmem>>, vector<256x48xf32>
    %c0_4 = arith.constant 0 : index
    %c0_5 = arith.constant 0 : index
    %5 = vector.load %arg3[%c0_4, %c0_5] : memref<48x8xf32, #tpu.memory_space<vmem>>, vector<48x8xf32>
    %cst = arith.constant dense<0.000000e+00> : vector<256x8xf32>
    %6 = tpu.matmul %4, %5, %cst {dimension_numbers = #tpu.dot_dimension_numbers<[1], [0], [0], [1], [0, 0, 1, 1], [], []>} : vector<256x48xf32>, vector<48x8xf32>, vector<256x8xf32> -> vector<256x8xf32>
    %7 = arith.addf %3, %6 : vector<256x8xf32>
    %c0_6 = arith.constant 0 : index
    %c0_7 = arith.constant 0 : index
    %8 = vector.load %arg6[%c0_6, %c0_7] : memref<256x8xf32, #tpu.memory_space<vmem>>, vector<256x8xf32>
    tpu.vector_store %arg6[%c0_6, %c0_7], %7 {strides = array<i32>} : memref<256x8xf32, #tpu.memory_space<vmem>>, vector<256x8xf32>,
    %c0_i32_8 = arith.constant 0 : i32
    %9 = arith.cmpi eq, %arg1, %c0_i32_8 : i32
    %10 = arith.extui %9 : i1 to i32
    %c0_i32_9 = arith.constant 0 : i32
    %11 = arith.cmpi ne, %10, %c0_i32_9 : i32
    scf.if %11 {
      %c0_10 = arith.constant 0 : index
      %c0_11 = arith.constant 0 : index
      %12 = vector.load %arg6[%c0_10, %c0_11] : memref<256x8xf32, #tpu.memory_space<vmem>>, vector<256x8xf32>
      %c0_12 = arith.constant 0 : index
      %c0_13 = arith.constant 0 : index
      %13 = vector.load %arg4[%c0_12, %c0_13] : memref<1x8xf32, #tpu.memory_space<vmem>>, vector<1x8xf32>
      %14 = vector.broadcast %13 : vector<1x8xf32> to vector<256x8xf32>
      %15 = arith.addf %12, %14 : vector<256x8xf32>
      %cst_14 = arith.constant 0.000000e+00 : f32
      %16 = vector.broadcast %cst_14 : f32 to vector<256x8xf32>
      %17 = arith.cmpf oge, %15, %16 : vector<256x8xf32>
      %cst_15 = arith.constant 2.000000e-01 : f32
      %18 = vector.broadcast %cst_15 : f32 to vector<256x8xf32>
      %19 = arith.mulf %18, %15 : vector<256x8xf32>
      %20 = arith.select %17, %15, %19 : vector<256x8xi1>, vector<256x8xf32>
      %c0_16 = arith.constant 0 : index
      %c0_17 = arith.constant 0 : index
      %21 = vector.load %arg5[%c0_16, %c0_17] : memref<256x8xf32, #tpu.memory_space<vmem>>, vector<256x8xf32>
      tpu.vector_store %arg5[%c0_16, %c0_17], %20 {strides = array<i32>} : memref<256x8xf32, #tpu.memory_space<vmem>>, vector<256x8xf32>,
    } else {
    }
    return
  }
  func.func @transform_0(%arg0: i32, %arg1: i32) -> (i32, i32) {
    %c0_i32 = arith.constant 0 : i32
    return %arg0, %arg1 : i32, i32
  }
  func.func @transform_1(%arg0: i32, %arg1: i32) -> (i32, i32) {
    %c0_i32 = arith.constant 0 : i32
    %c0_i32_0 = arith.constant 0 : i32
    return %arg1, %c0_i32 : i32, i32
  }
  func.func @transform_2(%arg0: i32, %arg1: i32) -> (i32, i32) {
    %c0_i32 = arith.constant 0 : i32
    %c0_i32_0 = arith.constant 0 : i32
    %c0_i32_1 = arith.constant 0 : i32
    return %c0_i32, %c0_i32_0 : i32, i32
  }
  func.func @transform_3(%arg0: i32, %arg1: i32) -> (i32, i32) {
    %c0_i32 = arith.constant 0 : i32
    %c0_i32_0 = arith.constant 0 : i32
    return %arg0, %c0_i32 : i32, i32
  }
}

module attributes {stable_mosaic.version = 11 : i64} {
  func.func @_matmul_stats_kernel(%arg0: i32, %arg1: i32, %arg2: memref<128x128xf32, #tpu.memory_space<vmem>>, %arg3: memref<128x16xf32, #tpu.memory_space<vmem>>, %arg4: memref<128x16xf32, #tpu.memory_space<vmem>>, %arg5: memref<1x1x16xf32, #tpu.memory_space<vmem>>, %arg6: memref<1x1x16xf32, #tpu.memory_space<vmem>>, %arg7: memref<128x16xf32, #tpu.memory_space<vmem>>) attributes {dimension_semantics = [#tpu.dimension_semantics<parallel>, #tpu.dimension_semantics<arbitrary>], iteration_bounds = array<i64: 1, 1>, scalar_prefetch = 0 : i64, scratch_operands = 1 : i64, tpu.core_type = #tpu.core_type<tc>, window_params = [{transform_indices = @transform_0, window_bounds = array<i64: 128, 128>}, {transform_indices = @transform_1, window_bounds = array<i64: 128, 16>}, {transform_indices = @transform_2, window_bounds = array<i64: 128, 16>}, {transform_indices = @transform_3, window_bounds = array<i64: 1, 1, 16>}, {transform_indices = @transform_4, window_bounds = array<i64: 1, 1, 16>}]} {
    %c0_i32 = arith.constant 0 : i32
    %0 = arith.cmpi eq, %arg1, %c0_i32 : i32
    %1 = arith.extui %0 : i1 to i32
    %c0_i32_0 = arith.constant 0 : i32
    %2 = arith.cmpi ne, %1, %c0_i32_0 : i32
    scf.if %2 {
      %cst_10 = arith.constant 0.000000e+00 : f32
      %12 = vector.broadcast %cst_10 : f32 to vector<128x16xf32>
      %c0_11 = arith.constant 0 : index
      %c0_12 = arith.constant 0 : index
      %13 = vector.load %arg7[%c0_11, %c0_12] : memref<128x16xf32, #tpu.memory_space<vmem>>, vector<128x16xf32>
      tpu.vector_store %arg7[%c0_11, %c0_12], %12 {strides = array<i32>} : memref<128x16xf32, #tpu.memory_space<vmem>>, vector<128x16xf32>,
    } else {
    }
    %c0 = arith.constant 0 : index
    %c0_1 = arith.constant 0 : index
    %3 = vector.load %arg7[%c0, %c0_1] : memref<128x16xf32, #tpu.memory_space<vmem>>, vector<128x16xf32>
    %c0_2 = arith.constant 0 : index
    %c0_3 = arith.constant 0 : index
    %4 = vector.load %arg2[%c0_2, %c0_3] : memref<128x128xf32, #tpu.memory_space<vmem>>, vector<128x128xf32>
    %c0_4 = arith.constant 0 : index
    %c0_5 = arith.constant 0 : index
    %5 = vector.load %arg3[%c0_4, %c0_5] : memref<128x16xf32, #tpu.memory_space<vmem>>, vector<128x16xf32>
    %cst = arith.constant dense<0.000000e+00> : vector<128x16xf32>
    %6 = tpu.matmul %4, %5, %cst {dimension_numbers = #tpu.dot_dimension_numbers<[1], [0], [0], [1], [0, 0, 1, 1], [], []>} : vector<128x128xf32>, vector<128x16xf32>, vector<128x16xf32> -> vector<128x16xf32>
    %7 = arith.addf %3, %6 : vector<128x16xf32>
    %c0_6 = arith.constant 0 : index
    %c0_7 = arith.constant 0 : index
    %8 = vector.load %arg7[%c0_6, %c0_7] : memref<128x16xf32, #tpu.memory_space<vmem>>, vector<128x16xf32>
    tpu.vector_store %arg7[%c0_6, %c0_7], %7 {strides = array<i32>} : memref<128x16xf32, #tpu.memory_space<vmem>>, vector<128x16xf32>,
    %c0_i32_8 = arith.constant 0 : i32
    %9 = arith.cmpi eq, %arg1, %c0_i32_8 : i32
    %10 = arith.extui %9 : i1 to i32
    %c0_i32_9 = arith.constant 0 : i32
    %11 = arith.cmpi ne, %10, %c0_i32_9 : i32
    scf.if %11 {
      %c0_10 = arith.constant 0 : index
      %c0_11 = arith.constant 0 : index
      %12 = vector.load %arg7[%c0_10, %c0_11] : memref<128x16xf32, #tpu.memory_space<vmem>>, vector<128x16xf32>
      %c0_12 = arith.constant 0 : index
      %c0_13 = arith.constant 0 : index
      %13 = vector.load %arg4[%c0_12, %c0_13] : memref<128x16xf32, #tpu.memory_space<vmem>>, vector<128x16xf32>
      tpu.vector_store %arg4[%c0_12, %c0_13], %12 {strides = array<i32>} : memref<128x16xf32, #tpu.memory_space<vmem>>, vector<128x16xf32>,
      %cst_14 = arith.constant dense<0.000000e+00> : vector<16xf32>
      %14 = vector.multi_reduction <add>, %12, %cst_14 [0] : vector<128x16xf32> to vector<16xf32>
      %15 = vector.shape_cast %14 : vector<16xf32> to vector<1x16xf32>
      %16 = vector.shape_cast %15 : vector<1x16xf32> to vector<1x1x16xf32>
      %c0_15 = arith.constant 0 : index
      %c0_16 = arith.constant 0 : index
      %c0_17 = arith.constant 0 : index
      %17 = vector.load %arg5[%c0_15, %c0_16, %c0_17] : memref<1x1x16xf32, #tpu.memory_space<vmem>>, vector<1x1x16xf32>
      tpu.vector_store %arg5[%c0_15, %c0_16, %c0_17], %16 {strides = array<i32>} : memref<1x1x16xf32, #tpu.memory_space<vmem>>, vector<1x1x16xf32>,
      %18 = arith.mulf %12, %12 : vector<128x16xf32>
      %cst_18 = arith.constant dense<0.000000e+00> : vector<16xf32>
      %19 = vector.multi_reduction <add>, %18, %cst_18 [0] : vector<128x16xf32> to vector<16xf32>
      %20 = vector.shape_cast %19 : vector<16xf32> to vector<1x16xf32>
      %21 = vector.shape_cast %20 : vector<1x16xf32> to vector<1x1x16xf32>
      %c0_19 = arith.constant 0 : index
      %c0_20 = arith.constant 0 : index
      %c0_21 = arith.constant 0 : index
      %22 = vector.load %arg6[%c0_19, %c0_20, %c0_21] : memref<1x1x16xf32, #tpu.memory_space<vmem>>, vector<1x1x16xf32>
      tpu.vector_store %arg6[%c0_19, %c0_20, %c0_21], %21 {strides = array<i32>} : memref<1x1x16xf32, #tpu.memory_space<vmem>>, vector<1x1x16xf32>,
    } else {
    }
    return
  }
  func.func @transform_0(%arg0: i32, %arg1: i32) -> (i32, i32) {
    %c0_i32 = arith.constant 0 : i32
    return %arg0, %arg1 : i32, i32
  }
  func.func @transform_1(%arg0: i32, %arg1: i32) -> (i32, i32) {
    %c0_i32 = arith.constant 0 : i32
    %c0_i32_0 = arith.constant 0 : i32
    return %arg1, %c0_i32 : i32, i32
  }
  func.func @transform_2(%arg0: i32, %arg1: i32) -> (i32, i32) {
    %c0_i32 = arith.constant 0 : i32
    %c0_i32_0 = arith.constant 0 : i32
    return %arg0, %c0_i32 : i32, i32
  }
  func.func @transform_3(%arg0: i32, %arg1: i32) -> (i32, i32, i32) {
    %c0_i32 = arith.constant 0 : i32
    %c0_i32_0 = arith.constant 0 : i32
    %c0_i32_1 = arith.constant 0 : i32
    return %arg0, %c0_i32, %c0_i32_0 : i32, i32, i32
  }
  func.func @transform_4(%arg0: i32, %arg1: i32) -> (i32, i32, i32) {
    %c0_i32 = arith.constant 0 : i32
    %c0_i32_0 = arith.constant 0 : i32
    %c0_i32_1 = arith.constant 0 : i32
    return %arg0, %c0_i32, %c0_i32_0 : i32, i32, i32
  }
}

module attributes {stable_mosaic.version = 11 : i64} {
  func.func @_affine_act_kernel(%arg0: i32, %arg1: memref<128x16xf32, #tpu.memory_space<vmem>>, %arg2: memref<1x16xf32, #tpu.memory_space<vmem>>, %arg3: memref<1x16xf32, #tpu.memory_space<vmem>>, %arg4: memref<128x16xf32, #tpu.memory_space<vmem>>) attributes {dimension_semantics = [#tpu.dimension_semantics<parallel>], iteration_bounds = array<i64: 1>, scalar_prefetch = 0 : i64, scratch_operands = 0 : i64, tpu.core_type = #tpu.core_type<tc>, window_params = [{transform_indices = @transform_0, window_bounds = array<i64: 128, 16>}, {pipeline_mode = #tpu.pipeline_mode<synchronous>, transform_indices = @transform_1, window_bounds = array<i64: 1, 16>}, {pipeline_mode = #tpu.pipeline_mode<synchronous>, transform_indices = @transform_2, window_bounds = array<i64: 1, 16>}, {transform_indices = @transform_3, window_bounds = array<i64: 128, 16>}]} {
    %c0 = arith.constant 0 : index
    %c0_0 = arith.constant 0 : index
    %0 = vector.load %arg1[%c0, %c0_0] : memref<128x16xf32, #tpu.memory_space<vmem>>, vector<128x16xf32>
    %c0_1 = arith.constant 0 : index
    %c0_2 = arith.constant 0 : index
    %1 = vector.load %arg2[%c0_1, %c0_2] : memref<1x16xf32, #tpu.memory_space<vmem>>, vector<1x16xf32>
    %2 = vector.broadcast %1 : vector<1x16xf32> to vector<128x16xf32>
    %3 = arith.mulf %0, %2 : vector<128x16xf32>
    %c0_3 = arith.constant 0 : index
    %c0_4 = arith.constant 0 : index
    %4 = vector.load %arg3[%c0_3, %c0_4] : memref<1x16xf32, #tpu.memory_space<vmem>>, vector<1x16xf32>
    %5 = vector.broadcast %4 : vector<1x16xf32> to vector<128x16xf32>
    %6 = arith.addf %3, %5 : vector<128x16xf32>
    %cst = arith.constant 0.000000e+00 : f32
    %7 = vector.broadcast %cst : f32 to vector<128x16xf32>
    %8 = arith.cmpf oge, %6, %7 : vector<128x16xf32>
    %cst_5 = arith.constant 2.000000e-01 : f32
    %9 = vector.broadcast %cst_5 : f32 to vector<128x16xf32>
    %10 = arith.mulf %9, %6 : vector<128x16xf32>
    %11 = arith.select %8, %6, %10 : vector<128x16xi1>, vector<128x16xf32>
    %c0_6 = arith.constant 0 : index
    %c0_7 = arith.constant 0 : index
    %12 = vector.load %arg4[%c0_6, %c0_7] : memref<128x16xf32, #tpu.memory_space<vmem>>, vector<128x16xf32>
    tpu.vector_store %arg4[%c0_6, %c0_7], %11 {strides = array<i32>} : memref<128x16xf32, #tpu.memory_space<vmem>>, vector<128x16xf32>,
    return
  }
  func.func @transform_0(%arg0: i32) -> (i32, i32) {
    %c0_i32 = arith.constant 0 : i32
    %c0_i32_0 = arith.constant 0 : i32
    return %arg0, %c0_i32 : i32, i32
  }
  func.func @transform_1(%arg0: i32) -> (i32, i32) {
    %c0_i32 = arith.constant 0 : i32
    %c0_i32_0 = arith.constant 0 : i32
    %c0_i32_1 = arith.constant 0 : i32
    return %c0_i32, %c0_i32_0 : i32, i32
  }
  func.func @transform_2(%arg0: i32) -> (i32, i32) {
    %c0_i32 = arith.constant 0 : i32
    %c0_i32_0 = arith.constant 0 : i32
    %c0_i32_1 = arith.constant 0 : i32
    return %c0_i32, %c0_i32_0 : i32, i32
  }
  func.func @transform_3(%arg0: i32) -> (i32, i32) {
    %c0_i32 = arith.constant 0 : i32
    %c0_i32_0 = arith.constant 0 : i32
    return %arg0, %c0_i32 : i32, i32
  }
}

module attributes {stable_mosaic.version = 11 : i64} {
  func.func @_matmul_stats_kernel(%arg0: i32, %arg1: i32, %arg2: memref<32x256xf32, #tpu.memory_space<vmem>>, %arg3: memref<256x32xf32, #tpu.memory_space<vmem>>, %arg4: memref<32x32xf32, #tpu.memory_space<vmem>>, %arg5: memref<1x1x32xf32, #tpu.memory_space<vmem>>, %arg6: memref<1x1x32xf32, #tpu.memory_space<vmem>>, %arg7: memref<32x32xf32, #tpu.memory_space<vmem>>) attributes {dimension_semantics = [#tpu.dimension_semantics<parallel>, #tpu.dimension_semantics<arbitrary>], iteration_bounds = array<i64: 1, 1>, scalar_prefetch = 0 : i64, scratch_operands = 1 : i64, tpu.core_type = #tpu.core_type<tc>, window_params = [{transform_indices = @transform_0, window_bounds = array<i64: 32, 256>}, {transform_indices = @transform_1, window_bounds = array<i64: 256, 32>}, {transform_indices = @transform_2, window_bounds = array<i64: 32, 32>}, {transform_indices = @transform_3, window_bounds = array<i64: 1, 1, 32>}, {transform_indices = @transform_4, window_bounds = array<i64: 1, 1, 32>}]} {
    %c0_i32 = arith.constant 0 : i32
    %0 = arith.cmpi eq, %arg1, %c0_i32 : i32
    %1 = arith.extui %0 : i1 to i32
    %c0_i32_0 = arith.constant 0 : i32
    %2 = arith.cmpi ne, %1, %c0_i32_0 : i32
    scf.if %2 {
      %cst_10 = arith.constant 0.000000e+00 : f32
      %12 = vector.broadcast %cst_10 : f32 to vector<32x32xf32>
      %c0_11 = arith.constant 0 : index
      %c0_12 = arith.constant 0 : index
      %13 = vector.load %arg7[%c0_11, %c0_12] : memref<32x32xf32, #tpu.memory_space<vmem>>, vector<32x32xf32>
      tpu.vector_store %arg7[%c0_11, %c0_12], %12 {strides = array<i32>} : memref<32x32xf32, #tpu.memory_space<vmem>>, vector<32x32xf32>,
    } else {
    }
    %c0 = arith.constant 0 : index
    %c0_1 = arith.constant 0 : index
    %3 = vector.load %arg7[%c0, %c0_1] : memref<32x32xf32, #tpu.memory_space<vmem>>, vector<32x32xf32>
    %c0_2 = arith.constant 0 : index
    %c0_3 = arith.constant 0 : index
    %4 = vector.load %arg2[%c0_2, %c0_3] : memref<32x256xf32, #tpu.memory_space<vmem>>, vector<32x256xf32>
    %c0_4 = arith.constant 0 : index
    %c0_5 = arith.constant 0 : index
    %5 = vector.load %arg3[%c0_4, %c0_5] : memref<256x32xf32, #tpu.memory_space<vmem>>, vector<256x32xf32>
    %cst = arith.constant dense<0.000000e+00> : vector<32x32xf32>
    %6 = tpu.matmul %4, %5, %cst {dimension_numbers = #tpu.dot_dimension_numbers<[1], [0], [0], [1], [0, 0, 1, 1], [], []>} : vector<32x256xf32>, vector<256x32xf32>, vector<32x32xf32> -> vector<32x32xf32>
    %7 = arith.addf %3, %6 : vector<32x32xf32>
    %c0_6 = arith.constant 0 : index
    %c0_7 = arith.constant 0 : index
    %8 = vector.load %arg7[%c0_6, %c0_7] : memref<32x32xf32, #tpu.memory_space<vmem>>, vector<32x32xf32>
    tpu.vector_store %arg7[%c0_6, %c0_7], %7 {strides = array<i32>} : memref<32x32xf32, #tpu.memory_space<vmem>>, vector<32x32xf32>,
    %c0_i32_8 = arith.constant 0 : i32
    %9 = arith.cmpi eq, %arg1, %c0_i32_8 : i32
    %10 = arith.extui %9 : i1 to i32
    %c0_i32_9 = arith.constant 0 : i32
    %11 = arith.cmpi ne, %10, %c0_i32_9 : i32
    scf.if %11 {
      %c0_10 = arith.constant 0 : index
      %c0_11 = arith.constant 0 : index
      %12 = vector.load %arg7[%c0_10, %c0_11] : memref<32x32xf32, #tpu.memory_space<vmem>>, vector<32x32xf32>
      %c0_12 = arith.constant 0 : index
      %c0_13 = arith.constant 0 : index
      %13 = vector.load %arg4[%c0_12, %c0_13] : memref<32x32xf32, #tpu.memory_space<vmem>>, vector<32x32xf32>
      tpu.vector_store %arg4[%c0_12, %c0_13], %12 {strides = array<i32>} : memref<32x32xf32, #tpu.memory_space<vmem>>, vector<32x32xf32>,
      %cst_14 = arith.constant dense<0.000000e+00> : vector<32xf32>
      %14 = vector.multi_reduction <add>, %12, %cst_14 [0] : vector<32x32xf32> to vector<32xf32>
      %15 = vector.shape_cast %14 : vector<32xf32> to vector<1x32xf32>
      %16 = vector.shape_cast %15 : vector<1x32xf32> to vector<1x1x32xf32>
      %c0_15 = arith.constant 0 : index
      %c0_16 = arith.constant 0 : index
      %c0_17 = arith.constant 0 : index
      %17 = vector.load %arg5[%c0_15, %c0_16, %c0_17] : memref<1x1x32xf32, #tpu.memory_space<vmem>>, vector<1x1x32xf32>
      tpu.vector_store %arg5[%c0_15, %c0_16, %c0_17], %16 {strides = array<i32>} : memref<1x1x32xf32, #tpu.memory_space<vmem>>, vector<1x1x32xf32>,
      %18 = arith.mulf %12, %12 : vector<32x32xf32>
      %cst_18 = arith.constant dense<0.000000e+00> : vector<32xf32>
      %19 = vector.multi_reduction <add>, %18, %cst_18 [0] : vector<32x32xf32> to vector<32xf32>
      %20 = vector.shape_cast %19 : vector<32xf32> to vector<1x32xf32>
      %21 = vector.shape_cast %20 : vector<1x32xf32> to vector<1x1x32xf32>
      %c0_19 = arith.constant 0 : index
      %c0_20 = arith.constant 0 : index
      %c0_21 = arith.constant 0 : index
      %22 = vector.load %arg6[%c0_19, %c0_20, %c0_21] : memref<1x1x32xf32, #tpu.memory_space<vmem>>, vector<1x1x32xf32>
      tpu.vector_store %arg6[%c0_19, %c0_20, %c0_21], %21 {strides = array<i32>} : memref<1x1x32xf32, #tpu.memory_space<vmem>>, vector<1x1x32xf32>,
    } else {
    }
    return
  }
  func.func @transform_0(%arg0: i32, %arg1: i32) -> (i32, i32) {
    %c0_i32 = arith.constant 0 : i32
    return %arg0, %arg1 : i32, i32
  }
  func.func @transform_1(%arg0: i32, %arg1: i32) -> (i32, i32) {
    %c0_i32 = arith.constant 0 : i32
    %c0_i32_0 = arith.constant 0 : i32
    return %arg1, %c0_i32 : i32, i32
  }
  func.func @transform_2(%arg0: i32, %arg1: i32) -> (i32, i32) {
    %c0_i32 = arith.constant 0 : i32
    %c0_i32_0 = arith.constant 0 : i32
    return %arg0, %c0_i32 : i32, i32
  }
  func.func @transform_3(%arg0: i32, %arg1: i32) -> (i32, i32, i32) {
    %c0_i32 = arith.constant 0 : i32
    %c0_i32_0 = arith.constant 0 : i32
    %c0_i32_1 = arith.constant 0 : i32
    return %arg0, %c0_i32, %c0_i32_0 : i32, i32, i32
  }
  func.func @transform_4(%arg0: i32, %arg1: i32) -> (i32, i32, i32) {
    %c0_i32 = arith.constant 0 : i32
    %c0_i32_0 = arith.constant 0 : i32
    %c0_i32_1 = arith.constant 0 : i32
    return %arg0, %c0_i32, %c0_i32_0 : i32, i32, i32
  }
}

module attributes {stable_mosaic.version = 11 : i64} {
  func.func @_affine_act_kernel(%arg0: i32, %arg1: memref<32x32xf32, #tpu.memory_space<vmem>>, %arg2: memref<1x32xf32, #tpu.memory_space<vmem>>, %arg3: memref<1x32xf32, #tpu.memory_space<vmem>>, %arg4: memref<32x32xf32, #tpu.memory_space<vmem>>) attributes {dimension_semantics = [#tpu.dimension_semantics<parallel>], iteration_bounds = array<i64: 1>, scalar_prefetch = 0 : i64, scratch_operands = 0 : i64, tpu.core_type = #tpu.core_type<tc>, window_params = [{transform_indices = @transform_0, window_bounds = array<i64: 32, 32>}, {pipeline_mode = #tpu.pipeline_mode<synchronous>, transform_indices = @transform_1, window_bounds = array<i64: 1, 32>}, {pipeline_mode = #tpu.pipeline_mode<synchronous>, transform_indices = @transform_2, window_bounds = array<i64: 1, 32>}, {transform_indices = @transform_3, window_bounds = array<i64: 32, 32>}]} {
    %c0 = arith.constant 0 : index
    %c0_0 = arith.constant 0 : index
    %0 = vector.load %arg1[%c0, %c0_0] : memref<32x32xf32, #tpu.memory_space<vmem>>, vector<32x32xf32>
    %c0_1 = arith.constant 0 : index
    %c0_2 = arith.constant 0 : index
    %1 = vector.load %arg2[%c0_1, %c0_2] : memref<1x32xf32, #tpu.memory_space<vmem>>, vector<1x32xf32>
    %2 = vector.broadcast %1 : vector<1x32xf32> to vector<32x32xf32>
    %3 = arith.mulf %0, %2 : vector<32x32xf32>
    %c0_3 = arith.constant 0 : index
    %c0_4 = arith.constant 0 : index
    %4 = vector.load %arg3[%c0_3, %c0_4] : memref<1x32xf32, #tpu.memory_space<vmem>>, vector<1x32xf32>
    %5 = vector.broadcast %4 : vector<1x32xf32> to vector<32x32xf32>
    %6 = arith.addf %3, %5 : vector<32x32xf32>
    %cst = arith.constant 0.000000e+00 : f32
    %7 = vector.broadcast %cst : f32 to vector<32x32xf32>
    %8 = arith.cmpf oge, %6, %7 : vector<32x32xf32>
    %cst_5 = arith.constant 2.000000e-01 : f32
    %9 = vector.broadcast %cst_5 : f32 to vector<32x32xf32>
    %10 = arith.mulf %9, %6 : vector<32x32xf32>
    %11 = arith.select %8, %6, %10 : vector<32x32xi1>, vector<32x32xf32>
    %c0_6 = arith.constant 0 : index
    %c0_7 = arith.constant 0 : index
    %12 = vector.load %arg4[%c0_6, %c0_7] : memref<32x32xf32, #tpu.memory_space<vmem>>, vector<32x32xf32>
    tpu.vector_store %arg4[%c0_6, %c0_7], %11 {strides = array<i32>} : memref<32x32xf32, #tpu.memory_space<vmem>>, vector<32x32xf32>,
    return
  }
  func.func @transform_0(%arg0: i32) -> (i32, i32) {
    %c0_i32 = arith.constant 0 : i32
    %c0_i32_0 = arith.constant 0 : i32
    return %arg0, %c0_i32 : i32, i32
  }
  func.func @transform_1(%arg0: i32) -> (i32, i32) {
    %c0_i32 = arith.constant 0 : i32
    %c0_i32_0 = arith.constant 0 : i32
    %c0_i32_1 = arith.constant 0 : i32
    return %c0_i32, %c0_i32_0 : i32, i32
  }
  func.func @transform_2(%arg0: i32) -> (i32, i32) {
    %c0_i32 = arith.constant 0 : i32
    %c0_i32_0 = arith.constant 0 : i32
    %c0_i32_1 = arith.constant 0 : i32
    return %c0_i32, %c0_i32_0 : i32, i32
  }
  func.func @transform_3(%arg0: i32) -> (i32, i32) {
    %c0_i32 = arith.constant 0 : i32
    %c0_i32_0 = arith.constant 0 : i32
    return %arg0, %c0_i32 : i32, i32
  }
}

module attributes {stable_mosaic.version = 11 : i64} {
  func.func @_matmul_stats_kernel(%arg0: i32, %arg1: i32, %arg2: memref<8x512xf32, #tpu.memory_space<vmem>>, %arg3: memref<512x64xf32, #tpu.memory_space<vmem>>, %arg4: memref<8x64xf32, #tpu.memory_space<vmem>>, %arg5: memref<1x1x64xf32, #tpu.memory_space<vmem>>, %arg6: memref<1x1x64xf32, #tpu.memory_space<vmem>>, %arg7: memref<8x64xf32, #tpu.memory_space<vmem>>) attributes {dimension_semantics = [#tpu.dimension_semantics<parallel>, #tpu.dimension_semantics<arbitrary>], iteration_bounds = array<i64: 1, 1>, scalar_prefetch = 0 : i64, scratch_operands = 1 : i64, tpu.core_type = #tpu.core_type<tc>, window_params = [{transform_indices = @transform_0, window_bounds = array<i64: 8, 512>}, {transform_indices = @transform_1, window_bounds = array<i64: 512, 64>}, {transform_indices = @transform_2, window_bounds = array<i64: 8, 64>}, {transform_indices = @transform_3, window_bounds = array<i64: 1, 1, 64>}, {transform_indices = @transform_4, window_bounds = array<i64: 1, 1, 64>}]} {
    %c0_i32 = arith.constant 0 : i32
    %0 = arith.cmpi eq, %arg1, %c0_i32 : i32
    %1 = arith.extui %0 : i1 to i32
    %c0_i32_0 = arith.constant 0 : i32
    %2 = arith.cmpi ne, %1, %c0_i32_0 : i32
    scf.if %2 {
      %cst_10 = arith.constant 0.000000e+00 : f32
      %12 = vector.broadcast %cst_10 : f32 to vector<8x64xf32>
      %c0_11 = arith.constant 0 : index
      %c0_12 = arith.constant 0 : index
      %13 = vector.load %arg7[%c0_11, %c0_12] : memref<8x64xf32, #tpu.memory_space<vmem>>, vector<8x64xf32>
      tpu.vector_store %arg7[%c0_11, %c0_12], %12 {strides = array<i32>} : memref<8x64xf32, #tpu.memory_space<vmem>>, vector<8x64xf32>,
    } else {
    }
    %c0 = arith.constant 0 : index
    %c0_1 = arith.constant 0 : index
    %3 = vector.load %arg7[%c0, %c0_1] : memref<8x64xf32, #tpu.memory_space<vmem>>, vector<8x64xf32>
    %c0_2 = arith.constant 0 : index
    %c0_3 = arith.constant 0 : index
    %4 = vector.load %arg2[%c0_2, %c0_3] : memref<8x512xf32, #tpu.memory_space<vmem>>, vector<8x512xf32>
    %c0_4 = arith.constant 0 : index
    %c0_5 = arith.constant 0 : index
    %5 = vector.load %arg3[%c0_4, %c0_5] : memref<512x64xf32, #tpu.memory_space<vmem>>, vector<512x64xf32>
    %cst = arith.constant dense<0.000000e+00> : vector<8x64xf32>
    %6 = tpu.matmul %4, %5, %cst {dimension_numbers = #tpu.dot_dimension_numbers<[1], [0], [0], [1], [0, 0, 1, 1], [], []>} : vector<8x512xf32>, vector<512x64xf32>, vector<8x64xf32> -> vector<8x64xf32>
    %7 = arith.addf %3, %6 : vector<8x64xf32>
    %c0_6 = arith.constant 0 : index
    %c0_7 = arith.constant 0 : index
    %8 = vector.load %arg7[%c0_6, %c0_7] : memref<8x64xf32, #tpu.memory_space<vmem>>, vector<8x64xf32>
    tpu.vector_store %arg7[%c0_6, %c0_7], %7 {strides = array<i32>} : memref<8x64xf32, #tpu.memory_space<vmem>>, vector<8x64xf32>,
    %c0_i32_8 = arith.constant 0 : i32
    %9 = arith.cmpi eq, %arg1, %c0_i32_8 : i32
    %10 = arith.extui %9 : i1 to i32
    %c0_i32_9 = arith.constant 0 : i32
    %11 = arith.cmpi ne, %10, %c0_i32_9 : i32
    scf.if %11 {
      %c0_10 = arith.constant 0 : index
      %c0_11 = arith.constant 0 : index
      %12 = vector.load %arg7[%c0_10, %c0_11] : memref<8x64xf32, #tpu.memory_space<vmem>>, vector<8x64xf32>
      %c0_12 = arith.constant 0 : index
      %c0_13 = arith.constant 0 : index
      %13 = vector.load %arg4[%c0_12, %c0_13] : memref<8x64xf32, #tpu.memory_space<vmem>>, vector<8x64xf32>
      tpu.vector_store %arg4[%c0_12, %c0_13], %12 {strides = array<i32>} : memref<8x64xf32, #tpu.memory_space<vmem>>, vector<8x64xf32>,
      %cst_14 = arith.constant dense<0.000000e+00> : vector<64xf32>
      %14 = vector.multi_reduction <add>, %12, %cst_14 [0] : vector<8x64xf32> to vector<64xf32>
      %15 = vector.shape_cast %14 : vector<64xf32> to vector<1x64xf32>
      %16 = vector.shape_cast %15 : vector<1x64xf32> to vector<1x1x64xf32>
      %c0_15 = arith.constant 0 : index
      %c0_16 = arith.constant 0 : index
      %c0_17 = arith.constant 0 : index
      %17 = vector.load %arg5[%c0_15, %c0_16, %c0_17] : memref<1x1x64xf32, #tpu.memory_space<vmem>>, vector<1x1x64xf32>
      tpu.vector_store %arg5[%c0_15, %c0_16, %c0_17], %16 {strides = array<i32>} : memref<1x1x64xf32, #tpu.memory_space<vmem>>, vector<1x1x64xf32>,
      %18 = arith.mulf %12, %12 : vector<8x64xf32>
      %cst_18 = arith.constant dense<0.000000e+00> : vector<64xf32>
      %19 = vector.multi_reduction <add>, %18, %cst_18 [0] : vector<8x64xf32> to vector<64xf32>
      %20 = vector.shape_cast %19 : vector<64xf32> to vector<1x64xf32>
      %21 = vector.shape_cast %20 : vector<1x64xf32> to vector<1x1x64xf32>
      %c0_19 = arith.constant 0 : index
      %c0_20 = arith.constant 0 : index
      %c0_21 = arith.constant 0 : index
      %22 = vector.load %arg6[%c0_19, %c0_20, %c0_21] : memref<1x1x64xf32, #tpu.memory_space<vmem>>, vector<1x1x64xf32>
      tpu.vector_store %arg6[%c0_19, %c0_20, %c0_21], %21 {strides = array<i32>} : memref<1x1x64xf32, #tpu.memory_space<vmem>>, vector<1x1x64xf32>,
    } else {
    }
    return
  }
  func.func @transform_0(%arg0: i32, %arg1: i32) -> (i32, i32) {
    %c0_i32 = arith.constant 0 : i32
    return %arg0, %arg1 : i32, i32
  }
  func.func @transform_1(%arg0: i32, %arg1: i32) -> (i32, i32) {
    %c0_i32 = arith.constant 0 : i32
    %c0_i32_0 = arith.constant 0 : i32
    return %arg1, %c0_i32 : i32, i32
  }
  func.func @transform_2(%arg0: i32, %arg1: i32) -> (i32, i32) {
    %c0_i32 = arith.constant 0 : i32
    %c0_i32_0 = arith.constant 0 : i32
    return %arg0, %c0_i32 : i32, i32
  }
  func.func @transform_3(%arg0: i32, %arg1: i32) -> (i32, i32, i32) {
    %c0_i32 = arith.constant 0 : i32
    %c0_i32_0 = arith.constant 0 : i32
    %c0_i32_1 = arith.constant 0 : i32
    return %arg0, %c0_i32, %c0_i32_0 : i32, i32, i32
  }
  func.func @transform_4(%arg0: i32, %arg1: i32) -> (i32, i32, i32) {
    %c0_i32 = arith.constant 0 : i32
    %c0_i32_0 = arith.constant 0 : i32
    %c0_i32_1 = arith.constant 0 : i32
    return %arg0, %c0_i32, %c0_i32_0 : i32, i32, i32
  }
}

module attributes {stable_mosaic.version = 11 : i64} {
  func.func @_affine_act_kernel(%arg0: i32, %arg1: memref<8x64xf32, #tpu.memory_space<vmem>>, %arg2: memref<1x64xf32, #tpu.memory_space<vmem>>, %arg3: memref<1x64xf32, #tpu.memory_space<vmem>>, %arg4: memref<8x64xf32, #tpu.memory_space<vmem>>) attributes {dimension_semantics = [#tpu.dimension_semantics<parallel>], iteration_bounds = array<i64: 1>, scalar_prefetch = 0 : i64, scratch_operands = 0 : i64, tpu.core_type = #tpu.core_type<tc>, window_params = [{transform_indices = @transform_0, window_bounds = array<i64: 8, 64>}, {pipeline_mode = #tpu.pipeline_mode<synchronous>, transform_indices = @transform_1, window_bounds = array<i64: 1, 64>}, {pipeline_mode = #tpu.pipeline_mode<synchronous>, transform_indices = @transform_2, window_bounds = array<i64: 1, 64>}, {transform_indices = @transform_3, window_bounds = array<i64: 8, 64>}]} {
    %c0 = arith.constant 0 : index
    %c0_0 = arith.constant 0 : index
    %0 = vector.load %arg1[%c0, %c0_0] : memref<8x64xf32, #tpu.memory_space<vmem>>, vector<8x64xf32>
    %c0_1 = arith.constant 0 : index
    %c0_2 = arith.constant 0 : index
    %1 = vector.load %arg2[%c0_1, %c0_2] : memref<1x64xf32, #tpu.memory_space<vmem>>, vector<1x64xf32>
    %2 = vector.broadcast %1 : vector<1x64xf32> to vector<8x64xf32>
    %3 = arith.mulf %0, %2 : vector<8x64xf32>
    %c0_3 = arith.constant 0 : index
    %c0_4 = arith.constant 0 : index
    %4 = vector.load %arg3[%c0_3, %c0_4] : memref<1x64xf32, #tpu.memory_space<vmem>>, vector<1x64xf32>
    %5 = vector.broadcast %4 : vector<1x64xf32> to vector<8x64xf32>
    %6 = arith.addf %3, %5 : vector<8x64xf32>
    %cst = arith.constant 0.000000e+00 : f32
    %7 = vector.broadcast %cst : f32 to vector<8x64xf32>
    %8 = arith.cmpf oge, %6, %7 : vector<8x64xf32>
    %cst_5 = arith.constant 2.000000e-01 : f32
    %9 = vector.broadcast %cst_5 : f32 to vector<8x64xf32>
    %10 = arith.mulf %9, %6 : vector<8x64xf32>
    %11 = arith.select %8, %6, %10 : vector<8x64xi1>, vector<8x64xf32>
    %c0_6 = arith.constant 0 : index
    %c0_7 = arith.constant 0 : index
    %12 = vector.load %arg4[%c0_6, %c0_7] : memref<8x64xf32, #tpu.memory_space<vmem>>, vector<8x64xf32>
    tpu.vector_store %arg4[%c0_6, %c0_7], %11 {strides = array<i32>} : memref<8x64xf32, #tpu.memory_space<vmem>>, vector<8x64xf32>,
    return
  }
  func.func @transform_0(%arg0: i32) -> (i32, i32) {
    %c0_i32 = arith.constant 0 : i32
    %c0_i32_0 = arith.constant 0 : i32
    return %arg0, %c0_i32 : i32, i32
  }
  func.func @transform_1(%arg0: i32) -> (i32, i32) {
    %c0_i32 = arith.constant 0 : i32
    %c0_i32_0 = arith.constant 0 : i32
    %c0_i32_1 = arith.constant 0 : i32
    return %c0_i32, %c0_i32_0 : i32, i32
  }
  func.func @transform_2(%arg0: i32) -> (i32, i32) {
    %c0_i32 = arith.constant 0 : i32
    %c0_i32_0 = arith.constant 0 : i32
    %c0_i32_1 = arith.constant 0 : i32
    return %c0_i32, %c0_i32_0 : i32, i32
  }
  func.func @transform_3(%arg0: i32) -> (i32, i32) {
    %c0_i32 = arith.constant 0 : i32
    %c0_i32_0 = arith.constant 0 : i32
    return %arg0, %c0_i32 : i32, i32
  }
}

</mosaic_0001>

<llo_original>
// kernel: encoder_forward.7
$region0: #{encoder_forward.7}
  #allocation0 [shape = 'u32[]', space=smem, size = 0x4, offset = 0x4, fixed_abs, tag = 'smem constant byte address 0x4 - core index']
  #allocation1 [shape = 'u32[72,128]{1,0:T(1,128)}', space=vmem, size = 0x9000, scoped, tag = 'internal scratch']
  #allocation2 [shape = 'f32[256,8]{1,0:T(8,128)}', space=vmem, size = 0x20000, scoped, tag = 'scratch operand']
  %s0 = inlined_call_operand.vmem [shape: f32[512,48], index: 0, kind: input, shape index: {}]
  %s1 = inlined_call_operand.vmem [shape: f32[48,8], index: 1, kind: input, shape index: {}]
  %s2 = inlined_call_operand.vmem [shape: f32[1,8], index: 2, kind: input, shape index: {}]
  %s3 = inlined_call_operand.vmem [shape: f32[512,8], index: 3, kind: output, shape index: {}]
  %s4 = sld [smem:[#allocation0]]
  $region53: #{encoder_forward.7} parent=0
    _
  %s6 = ssub.s32 1, %s4
  %s7 = scalar_select 0, %s6, %s4
  loop: start=0, step=1, limit=4
  $region2: #{encoder_forward.7} parent=0 // loop_pre_header
    _
  $region3: #{encoder_forward.7} parent=0 // loop_header
    %s9 = sphi 0, %s13
    %p10 = scmp.ge.s32.totalorder %s9, 4
    %s16 = sphi 0, %s28
    %s17 = sphi 0, %s24
    %s18 = sphi 0, %s16
    %s19 = sphi 0, %s17
    %s20 = sphi 0, %s18
    %s21 = sphi 0, %s19
    %s33 = sphi 0, %s35
    %s36 = sphi 0, %s33
    %s37 = sphi 0, %s36
    %s53 = sphi 0, %s37
    %s59 = sphi 0, %s61
    %s62 = sphi 0, %s59
    %s63 = sphi 0, %s62
    %s79 = sphi 0, %s63
    %s83 = sphi 0, %s83
    %s85 = sphi 0, %s83
    %s86 = sphi 0, %s85
    %s100 = sphi 0, %s86
    %s106 = sphi 0, %s108
    %s109 = sphi 0, %s106
    %s110 = sphi 0, %s109
    %s126 = sphi 0, %s110
  $region4: #{encoder_forward.7} parent=0 // loop_header_branch
    %12 = sbr.rel (%p10) target = $region8
  $region5: #{encoder_forward.7} parent=0 // loop_body
    %s14 = ssub.s32 %s9, 1
    %s15 = ssub.s32 %s9, 2
    %s22 = sadd.s32 1, %s17
    %p23 = scmp.ge.s32.totalorder %s22, 1
    %s24 = scalar_select %p23, 0, %s22
    %s25 = sadd.s32 1, %s16
    %s26 = scalar_select %p23, %s25, %s16
    %p27 = scmp.ge.s32.totalorder %s26, 2
    %s28 = scalar_select %p27, 0, %s26
    %s29 = ssub.s32 %s16, %s28
    %s30 = ssub.s32 %s17, %s24
    %s31 = sor.u32 %s29, %s30
    %p32 = scmp.eq.s32.totalorder %s31, 0
    %s34 = sadd.s32 %s33, 1
    %s35 = scalar_select %p32, %s33, %s34
    %p38 = pneg %p32
    %p39 = scmp.eq.s32.totalorder %s9, 1
    %p40 = por %p38, %p39
    %p41 = scmp.ne.s32.totalorder %s33, %s36
    %p42 = scmp.eq.s32.totalorder %s9, 0
    %p43 = por %p41, %p42
    %p44 = scmp.ne.s32.totalorder %s33, %s36
    %p45 = scmp.eq.s32.totalorder %s14, 1
    %p46 = por %p44, %p45
    %p47 = scmp.ne.s32.totalorder %s36, %s37
    %p48 = scmp.eq.s32.totalorder %s14, 0
    %p49 = por %p47, %p48
    %p50 = scmp.ne.s32.totalorder %s36, %s37
    %p51 = scmp.eq.s32.totalorder %s15, 1
    %p52 = por %p50, %p51
    %p54 = scmp.ne.s32.totalorder %s37, %s53
    %p55 = scmp.eq.s32.totalorder %s15, 0
    %p56 = por %p54, %p55
    %s57 = ssub.s32 %s17, %s24
    %p58 = scmp.eq.s32.totalorder %s57, 0
    %s60 = sadd.s32 %s59, 1
    %s61 = scalar_select %p58, %s59, %s60
    %p64 = pneg %p58
    %p65 = scmp.eq.s32.totalorder %s9, 1
    %p66 = por %p64, %p65
    %p67 = scmp.ne.s32.totalorder %s59, %s62
    %p68 = scmp.eq.s32.totalorder %s9, 0
    %p69 = por %p67, %p68
    %p70 = scmp.ne.s32.totalorder %s59, %s62
    %p71 = scmp.eq.s32.totalorder %s14, 1
    %p72 = por %p70, %p71
    %p73 = scmp.ne.s32.totalorder %s62, %s63
    %p74 = scmp.eq.s32.totalorder %s14, 0
    %p75 = por %p73, %p74
    %p76 = scmp.ne.s32.totalorder %s62, %s63
    %p77 = scmp.eq.s32.totalorder %s15, 1
    %p78 = por %p76, %p77
    %p80 = scmp.ne.s32.totalorder %s63, %s79
    %p81 = scmp.eq.s32.totalorder %s15, 0
    %p82 = por %p80, %p81
    %s84 = sadd.s32 %s83, 1
    %p87 = scmp.eq.s32.totalorder %s9, 1
    %p88 = scmp.ne.s32.totalorder %s83, %s85
    %p89 = scmp.eq.s32.totalorder %s9, 0
    %p90 = por %p88, %p89
    %p91 = scmp.ne.s32.totalorder %s83, %s85
    %p92 = scmp.eq.s32.totalorder %s14, 1
    %p93 = por %p91, %p92
    %p94 = scmp.ne.s32.totalorder %s85, %s86
    %p95 = scmp.eq.s32.totalorder %s14, 0
    %p96 = por %p94, %p95
    %p97 = scmp.ne.s32.totalorder %s85, %s86
    %p98 = scmp.eq.s32.totalorder %s15, 1
    %p99 = por %p97, %p98
    %p101 = scmp.ne.s32.totalorder %s86, %s100
    %p102 = scmp.eq.s32.totalorder %s15, 0
    %p103 = por %p101, %p102
    %s104 = ssub.s32 %s16, %s28
    %p105 = scmp.eq.s32.totalorder %s104, 0
    %s107 = sadd.s32 %s106, 1
    %s108 = scalar_select %p105, %s106, %s107
    %p111 = pneg %p105
    %p112 = scmp.eq.s32.totalorder %s9, 1
    %p113 = por %p111, %p112
    %p114 = scmp.ne.s32.totalorder %s106, %s109
    %p115 = scmp.eq.s32.totalorder %s9, 0
    %p116 = por %p114, %p115
    %p117 = scmp.ne.s32.totalorder %s106, %s109
    %p118 = scmp.eq.s32.totalorder %s14, 1
    %p119 = por %p117, %p118
    %p120 = scmp.ne.s32.totalorder %s109, %s110
    %p121 = scmp.eq.s32.totalorder %s14, 0
    %p122 = por %p120, %p121
    %p123 = scmp.ne.s32.totalorder %s109, %s110
    %p124 = scmp.eq.s32.totalorder %s15, 1
    %p125 = por %p123, %p124
    %p127 = scmp.ne.s32.totalorder %s110, %s126
    %p128 = scmp.eq.s32.totalorder %s15, 0
    %p129 = por %p127, %p128
    %p130 = scmp.le.s32.totalorder 1, %s9
    %p131 = scmp.lt.s32.totalorder %s9, 3
    %p132 = pnand %p130, %p131
    %p133 = pneg %p132
    // Predicated region
    $region9: #{encoder_forward.7} parent=5 // pred_check
      _
    $region10: #{encoder_forward.7} parent=5 // pred_check_branch
      %135 = sbr.rel (%p132) target = $region12
    $region11: #{encoder_forward.7} parent=5 // pred_region
      %s136 = ssub.s32 %s9, 1
      // Predicated region
      $region13: #{encoder_forward.7} parent=11 // pred_check
        %p137 = pneg %p75
      $region14: #{encoder_forward.7} parent=11 // pred_check_branch
        %139 = sbr.rel (%p137) target = $region16
      $region15: #{encoder_forward.7} parent=11 // pred_region
        %s140 = smul.u32 6, %s19
        %p141 = scmp.lt.s32.totalorder %s140, 5
        %s142 = scalar_select %p141, %s140, 5
        %s143 = smul.addr %s142, 8
        %s144 = scalar_lea.vmem %s1, %s143
        %s145 = smul.u32 6, %s19
      $region16: #{encoder_forward.7} parent=11 // pred_fallthru
        _
      // Predicated region
      $region17: #{encoder_forward.7} parent=11 // pred_check
        %p146 = pneg %p96
      $region18: #{encoder_forward.7} parent=11 // pred_check_branch
        %148 = sbr.rel (%p146) target = $region20
      $region19: #{encoder_forward.7} parent=11 // pred_region
        _
      $region20: #{encoder_forward.7} parent=11 // pred_fallthru
        _
    $region12: #{encoder_forward.7} parent=5 // pred_fallthru
      _
    %p149 = scmp.lt.s32.totalorder %s9, 2
    // Predicated region
    $region21: #{encoder_forward.7} parent=5 // pred_check
      %p150 = pneg %p149
    $region22: #{encoder_forward.7} parent=5 // pred_check_branch
      %152 = sbr.rel (%p150) target = $region24
    $region23: #{encoder_forward.7} parent=5 // pred_region
      // Predicated region
      $region25: #{encoder_forward.7} parent=23 // pred_check
        %p153 = pneg %p43
      $region26: #{encoder_forward.7} parent=23 // pred_check_branch
        %155 = sbr.rel (%p153) target = $region28
      $region27: #{encoder_forward.7} parent=23 // pred_region
        %s156 = smul.u32 32, %s16
        %p157 = scmp.lt.s32.totalorder %s156, 63
        %s158 = scalar_select %p157, %s156, 63
        %p159 = scmp.lt.s32.totalorder %s17, 0
        %s160 = scalar_select %p159, %s17, 0
        %s161 = sadd.s32 %s160, %s158
        %s162 = smul.addr %s161, 8
        %s163 = scalar_lea.vmem %s0, %s162
        %s164 = smul.u32 32, %s16
      $region28: #{encoder_forward.7} parent=23 // pred_fallthru
        _
    $region24: #{encoder_forward.7} parent=5 // pred_fallthru
      _
    %p165 = scmp.le.s32.totalorder 1, %s9
    %p166 = scmp.lt.s32.totalorder %s9, 3
    %p167 = pnand %p165, %p166
    %p168 = pneg %p167
    // Predicated region
    $region29: #{encoder_forward.7} parent=5 // pred_check
      _
    $region30: #{encoder_forward.7} parent=5 // pred_check_branch
      %170 = sbr.rel (%p167) target = $region32
    $region31: #{encoder_forward.7} parent=5 // pred_region
      %s171 = ssub.s32 %s9, 1
      %s172 = smul.u32 32, %s18
      %p173 = scmp.lt.s32.totalorder %s172, 63
      %s174 = scalar_select %p173, %s172, 63
      %p175 = scmp.lt.s32.totalorder %s19, 0
      %s176 = scalar_select %p175, %s19, 0
      %s177 = sadd.s32 %s176, %s174
      %s178 = smul.addr %s177, 8
      %s179 = scalar_lea.vmem %s0, %s178
      %p180 = pneg %p49
      %p181 = pneg %p46
      %s182 = smul.u32 6, %s19
      %p183 = scmp.lt.s32.totalorder %s182, 5
      %s184 = scalar_select %p183, %s182, 5
      %s185 = smul.addr %s184, 8
      %s186 = scalar_lea.vmem %s1, %s185
      %p187 = pneg %p75
      %p188 = pneg %p72
      %p189 = pneg %p96
      %p190 = pneg %p93
      %p191 = pneg %p122
      %p192 = pneg %p119
      %s193 = smul.u32 32, %s18
      %p194 = scmp.lt.s32.totalorder %s193, 63
      %s195 = scalar_select %p194, %s193, 63
      %s196 = smul.addr %s195, 8
      %s197 = scalar_lea.vmem %s3, %s196
      %s198 = smul.u32 32, %s18
      %p199 = scmp.lt.s32.totalorder %s198, 63
      %s200 = scalar_select %p199, %s198, 63
      %p201 = scmp.lt.s32.totalorder %s19, 0
      %s202 = scalar_select %p201, %s19, 0
      %s203 = sadd.s32 %s202, %s200
      %s204 = smul.addr %s203, 8
      %s205 = scalar_lea.vmem %s0, %s204
      %s206 = smul.u32 32, %s18
      %s207 = smul.u32 6, %s19
      %p208 = scmp.lt.s32.totalorder %s207, 5
      %s209 = scalar_select %p208, %s207, 5
      %s210 = smul.addr %s209, 8
      %s211 = scalar_lea.vmem %s1, %s210
      %s212 = smul.u32 6, %s19
      %s213 = smul.u32 32, %s18
      %p214 = scmp.lt.s32.totalorder %s213, 63
      %s215 = scalar_select %p214, %s213, 63
      %s216 = smul.addr %s215, 8
      %s217 = scalar_lea.vmem %s3, %s216
      %s218 = smul.u32 32, %s18
      %p219 = scmp.eq.s32.totalorder %s19, 0
      // Predicated region
      $region33: #{encoder_forward.7} parent=31 // pred_check
        %p220 = pneg %p219
      $region34: #{encoder_forward.7} parent=31 // pred_check_branch
        %222 = sbr.rel (%p220) target = $region36
      $region35: #{encoder_forward.7} parent=31 // pred_region
        %vm223 = vcmask 64512
        %224 = vst.msk [vmem:[#allocation2] sm:$0xff] %vm223, 0.0
        %225 = vst.msk [vmem:[#allocation2 + $0x8] sm:$0xff] %vm223, 0.0
        %226 = vst.msk [vmem:[#allocation2 + $0x10] sm:$0xff] %vm223, 0.0
        %227 = vst.msk [vmem:[#allocation2 + $0x18] sm:$0xff] %vm223, 0.0
        %228 = vst.msk [vmem:[#allocation2 + $0x20] sm:$0xff] %vm223, 0.0
        %229 = vst.msk [vmem:[#allocation2 + $0x28] sm:$0xff] %vm223, 0.0
        %230 = vst.msk [vmem:[#allocation2 + $0x30] sm:$0xff] %vm223, 0.0
        %231 = vst.msk [vmem:[#allocation2 + $0x38] sm:$0xff] %vm223, 0.0
        %232 = vst.msk [vmem:[#allocation2 + $0x40] sm:$0xff] %vm223, 0.0
        %233 = vst.msk [vmem:[#allocation2 + $0x48] sm:$0xff] %vm223, 0.0
        %234 = vst.msk [vmem:[#allocation2 + $0x50] sm:$0xff] %vm223, 0.0
        %235 = vst.msk [vmem:[#allocation2 + $0x58] sm:$0xff] %vm223, 0.0
        %236 = vst.msk [vmem:[#allocation2 + $0x60] sm:$0xff] %vm223, 0.0
        %237 = vst.msk [vmem:[#allocation2 + $0x68] sm:$0xff] %vm223, 0.0
        %238 = vst.msk [vmem:[#allocation2 + $0x70] sm:$0xff] %vm223, 0.0
        %239 = vst.msk [vmem:[#allocation2 + $0x78] sm:$0xff] %vm223, 0.0
        %240 = vst.msk [vmem:[#allocation2 + $0x80] sm:$0xff] %vm223, 0.0
        %241 = vst.msk [vmem:[#allocation2 + $0x88] sm:$0xff] %vm223, 0.0
        %242 = vst.msk [vmem:[#allocation2 + $0x90] sm:$0xff] %vm223, 0.0
        %243 = vst.msk [vmem:[#allocation2 + $0x98] sm:$0xff] %vm223, 0.0
        %244 = vst.msk [vmem:[#allocation2 + $0xa0] sm:$0xff] %vm223, 0.0
        %245 = vst.msk [vmem:[#allocation2 + $0xa8] sm:$0xff] %vm223, 0.0
        %246 = vst.msk [vmem:[#allocation2 + $0xb0] sm:$0xff] %vm223, 0.0
        %247 = vst.msk [vmem:[#allocation2 + $0xb8] sm:$0xff] %vm223, 0.0
        %248 = vst.msk [vmem:[#allocation2 + $0xc0] sm:$0xff] %vm223, 0.0
        %249 = vst.msk [vmem:[#allocation2 + $0xc8] sm:$0xff] %vm223, 0.0
        %250 = vst.msk [vmem:[#allocation2 + $0xd0] sm:$0xff] %vm223, 0.0
        %251 = vst.msk [vmem:[#allocation2 + $0xd8] sm:$0xff] %vm223, 0.0
        %252 = vst.msk [vmem:[#allocation2 + $0xe0] sm:$0xff] %vm223, 0.0
        %253 = vst.msk [vmem:[#allocation2 + $0xe8] sm:$0xff] %vm223, 0.0
        %254 = vst.msk [vmem:[#allocation2 + $0xf0] sm:$0xff] %vm223, 0.0
        %255 = vst.msk [vmem:[#allocation2 + $0xf8] sm:$0xff] %vm223, 0.0
      $region36: #{encoder_forward.7} parent=31 // pred_fallthru
        _
      %v256 = vld [vmem:[#allocation2] sm:$0xff]
      %v257 = vld [vmem:[#allocation2 + $0x8] sm:$0xff]
      %v258 = vld [vmem:[#allocation2 + $0x10] sm:$0xff]
      %v259 = vld [vmem:[#allocation2 + $0x18] sm:$0xff]
      %v260 = vld [vmem:[#allocation2 + $0x20] sm:$0xff]
      %v261 = vld [vmem:[#allocation2 + $0x28] sm:$0xff]
      %v262 = vld [vmem:[#allocation2 + $0x30] sm:$0xff]
      %v263 = vld [vmem:[#allocation2 + $0x38] sm:$0xff]
      %v264 = vld [vmem:[#allocation2 + $0x40] sm:$0xff]
      %v265 = vld [vmem:[#allocation2 + $0x48] sm:$0xff]
      %v266 = vld [vmem:[#allocation2 + $0x50] sm:$0xff]
      %v267 = vld [vmem:[#allocation2 + $0x58] sm:$0xff]
      %v268 = vld [vmem:[#allocation2 + $0x60] sm:$0xff]
      %v269 = vld [vmem:[#allocation2 + $0x68] sm:$0xff]
      %v270 = vld [vmem:[#allocation2 + $0x70] sm:$0xff]
      %v271 = vld [vmem:[#allocation2 + $0x78] sm:$0xff]
      %v272 = vld [vmem:[#allocation2 + $0x80] sm:$0xff]
      %v273 = vld [vmem:[#allocation2 + $0x88] sm:$0xff]
      %v274 = vld [vmem:[#allocation2 + $0x90] sm:$0xff]
      %v275 = vld [vmem:[#allocation2 + $0x98] sm:$0xff]
      %v276 = vld [vmem:[#allocation2 + $0xa0] sm:$0xff]
      %v277 = vld [vmem:[#allocation2 + $0xa8] sm:$0xff]
      %v278 = vld [vmem:[#allocation2 + $0xb0] sm:$0xff]
      %v279 = vld [vmem:[#allocation2 + $0xb8] sm:$0xff]
      %v280 = vld [vmem:[#allocation2 + $0xc0] sm:$0xff]
      %v281 = vld [vmem:[#allocation2 + $0xc8] sm:$0xff]
      %v282 = vld [vmem:[#allocation2 + $0xd0] sm:$0xff]
      %v283 = vld [vmem:[#allocation2 + $0xd8] sm:$0xff]
      %v284 = vld [vmem:[#allocation2 + $0xe0] sm:$0xff]
      %v285 = vld [vmem:[#allocation2 + $0xe8] sm:$0xff]
      %v286 = vld [vmem:[#allocation2 + $0xf0] sm:$0xff]
      %v287 = vld [vmem:[#allocation2 + $0xf8] sm:$0xff]
      %v288 = vld [vmem:[%s205] sm:$0xff]
      %v289 = vld [vmem:[%s205 + $0x8] sm:$0xff]
      %v290 = vld [vmem:[%s205 + $0x10] sm:$0xff]
      %v291 = vld [vmem:[%s205 + $0x18] sm:$0xff]
      %v292 = vld [vmem:[%s205 + $0x20] sm:$0xff]
      %v293 = vld [vmem:[%s205 + $0x28] sm:$0xff]
      %v294 = vld [vmem:[%s205 + $0x30] sm:$0xff]
      %v295 = vld [vmem:[%s205 + $0x38] sm:$0xff]
      %v296 = vld [vmem:[%s205 + $0x40] sm:$0xff]
      %v297 = vld [vmem:[%s205 + $0x48] sm:$0xff]
      %v298 = vld [vmem:[%s205 + $0x50] sm:$0xff]
      %v299 = vld [vmem:[%s205 + $0x58] sm:$0xff]
      %v300 = vld [vmem:[%s205 + $0x60] sm:$0xff]
      %v301 = vld [vmem:[%s205 + $0x68] sm:$0xff]
      %v302 = vld [vmem:[%s205 + $0x70] sm:$0xff]
      %v303 = vld [vmem:[%s205 + $0x78] sm:$0xff]
      %v304 = vld [vmem:[%s205 + $0x80] sm:$0xff]
      %v305 = vld [vmem:[%s205 + $0x88] sm:$0xff]
      %v306 = vld [vmem:[%s205 + $0x90] sm:$0xff]
      %v307 = vld [vmem:[%s205 + $0x98] sm:$0xff]
      %v308 = vld [vmem:[%s205 + $0xa0] sm:$0xff]
      %v309 = vld [vmem:[%s205 + $0xa8] sm:$0xff]
      %v310 = vld [vmem:[%s205 + $0xb0] sm:$0xff]
      %v311 = vld [vmem:[%s205 + $0xb8] sm:$0xff]
      %v312 = vld [vmem:[%s205 + $0xc0] sm:$0xff]
      %v313 = vld [vmem:[%s205 + $0xc8] sm:$0xff]
      %v314 = vld [vmem:[%s205 + $0xd0] sm:$0xff]
      %v315 = vld [vmem:[%s205 + $0xd8] sm:$0xff]
      %v316 = vld [vmem:[%s205 + $0xe0] sm:$0xff]
      %v317 = vld [vmem:[%s205 + $0xe8] sm:$0xff]
      %v318 = vld [vmem:[%s205 + $0xf0] sm:$0xff]
      %v319 = vld [vmem:[%s205 + $0xf8] sm:$0xff]
      %v320 = vld [vmem:[%s211] sm:$0xff]
      %v321 = vld [vmem:[%s211 + $0x8] sm:$0xff]
      %v322 = vld [vmem:[%s211 + $0x10] sm:$0xff]
      %v323 = vld [vmem:[%s211 + $0x18] sm:$0xff]
      %v324 = vld [vmem:[%s211 + $0x20] sm:$0xff]
      %v325 = vld [vmem:[%s211 + $0x28] sm:$0xff]
      %vm326 = vcmask 392192
      %v328 = vsel %vm326, %v288, 0
      %v331 = vsel %vm326, %v289, 0
      %v334 = vsel %vm326, %v290, 0
      %v337 = vsel %vm326, %v291, 0
      %v340 = vsel %vm326, %v292, 0
      %v343 = vsel %vm326, %v293, 0
      %v346 = vsel %vm326, %v294, 0
      %v349 = vsel %vm326, %v295, 0
      %v352 = vsel %vm326, %v296, 0
      %v355 = vsel %vm326, %v297, 0
      %v358 = vsel %vm326, %v298, 0
      %v361 = vsel %vm326, %v299, 0
      %v364 = vsel %vm326, %v300, 0
      %v367 = vsel %vm326, %v301, 0
      %v370 = vsel %vm326, %v302, 0
      %v373 = vsel %vm326, %v303, 0
      %v376 = vsel %vm326, %v304, 0
      %v379 = vsel %vm326, %v305, 0
      %v382 = vsel %vm326, %v306, 0
      %v385 = vsel %vm326, %v307, 0
      %v388 = vsel %vm326, %v308, 0
      %v391 = vsel %vm326, %v309, 0
      %v394 = vsel %vm326, %v310, 0
      %v397 = vsel %vm326, %v311, 0
      %v400 = vsel %vm326, %v312, 0
      %v403 = vsel %vm326, %v313, 0
      %v406 = vsel %vm326, %v314, 0
      %v409 = vsel %vm326, %v315, 0
      %v412 = vsel %vm326, %v316, 0
      %v415 = vsel %vm326, %v317, 0
      %v418 = vsel %vm326, %v318, 0
      %v421 = vsel %vm326, %v319, 0
      %423 = vmatpush.msra.mxu0 0.0
      %424 = vmatpush.msra.mxu0 0.0
      %425 = vmatpush.msra.mxu0 0.0
      %426 = vmatpush.msra.mxu0 0.0
      %427 = vmatpush.msra.mxu0 0.0
      %428 = vmatpush.msra.mxu0 0.0
      %429 = vmatpush.msra.mxu0 0.0
      %430 = vmatpush.msra.mxu0 0.0
      %431 = vmatpush.msra.mxu0 0.0
      %432 = vmatpush.msra.mxu0 0.0
      %433 = vmatpush.msra.mxu0 %v325
      %434 = vmatpush.msra.mxu0 %v324
      %435 = vmatpush.msra.mxu0 %v323
      %436 = vmatpush.msra.mxu0 %v322
      %437 = vmatpush.msra.mxu0 %v321
      %438 = vmatpush.msra.mxu0 %v320
      %439 = vmatmul.f32.gmra.mxu0 %v328
      %v440 = vpop.f32.mrf.mxu0
      %v441 = vadd.f32 0.0, %v440
      %442 = vmatmul.f32.gmra.mxu0 %v331
      %v443 = vpop.f32.mrf.mxu0
      %v444 = vadd.f32 0.0, %v443
      %445 = vmatmul.f32.gmra.mxu0 %v334
      %v446 = vpop.f32.mrf.mxu0
      %v447 = vadd.f32 0.0, %v446
      %448 = vmatmul.f32.gmra.mxu0 %v337
      %v449 = vpop.f32.mrf.mxu0
      %v450 = vadd.f32 0.0, %v449
      %451 = vmatmul.f32.gmra.mxu0 %v340
      %v452 = vpop.f32.mrf.mxu0
      %v453 = vadd.f32 0.0, %v452
      %454 = vmatmul.f32.gmra.mxu0 %v343
      %v455 = vpop.f32.mrf.mxu0
      %v456 = vadd.f32 0.0, %v455
      %457 = vmatmul.f32.gmra.mxu0 %v346
      %v458 = vpop.f32.mrf.mxu0
      %v459 = vadd.f32 0.0, %v458
      %460 = vmatmul.f32.gmra.mxu0 %v349
      %v461 = vpop.f32.mrf.mxu0
      %v462 = vadd.f32 0.0, %v461
      %463 = vmatmul.f32.gmra.mxu0 %v352
      %v464 = vpop.f32.mrf.mxu0
      %v465 = vadd.f32 0.0, %v464
      %466 = vmatmul.f32.gmra.mxu0 %v355
      %v467 = vpop.f32.mrf.mxu0
      %v468 = vadd.f32 0.0, %v467
      %469 = vmatmul.f32.gmra.mxu0 %v358
      %v470 = vpop.f32.mrf.mxu0
      %v471 = vadd.f32 0.0, %v470
      %472 = vmatmul.f32.gmra.mxu0 %v361
      %v473 = vpop.f32.mrf.mxu0
      %v474 = vadd.f32 0.0, %v473
      %475 = vmatmul.f32.gmra.mxu0 %v364
      %v476 = vpop.f32.mrf.mxu0
      %v477 = vadd.f32 0.0, %v476
      %478 = vmatmul.f32.gmra.mxu0 %v367
      %v479 = vpop.f32.mrf.mxu0
      %v480 = vadd.f32 0.0, %v479
      %481 = vmatmul.f32.gmra.mxu0 %v370
      %v482 = vpop.f32.mrf.mxu0
      %v483 = vadd.f32 0.0, %v482
      %484 = vmatmul.f32.gmra.mxu0 %v373
      %v485 = vpop.f32.mrf.mxu0
      %v486 = vadd.f32 0.0, %v485
      %487 = vmatmul.f32.gmra.mxu0 %v376
      %v488 = vpop.f32.mrf.mxu0
      %v489 = vadd.f32 0.0, %v488
      %490 = vmatmul.f32.gmra.mxu0 %v379
      %v491 = vpop.f32.mrf.mxu0
      %v492 = vadd.f32 0.0, %v491
      %493 = vmatmul.f32.gmra.mxu0 %v382
      %v494 = vpop.f32.mrf.mxu0
      %v495 = vadd.f32 0.0, %v494
      %496 = vmatmul.f32.gmra.mxu0 %v385
      %v497 = vpop.f32.mrf.mxu0
      %v498 = vadd.f32 0.0, %v497
      %499 = vmatmul.f32.gmra.mxu0 %v388
      %v500 = vpop.f32.mrf.mxu0
      %v501 = vadd.f32 0.0, %v500
      %502 = vmatmul.f32.gmra.mxu0 %v391
      %v503 = vpop.f32.mrf.mxu0
      %v504 = vadd.f32 0.0, %v503
      %505 = vmatmul.f32.gmra.mxu0 %v394
      %v506 = vpop.f32.mrf.mxu0
      %v507 = vadd.f32 0.0, %v506
      %508 = vmatmul.f32.gmra.mxu0 %v397
      %v509 = vpop.f32.mrf.mxu0
      %v510 = vadd.f32 0.0, %v509
      %511 = vmatmul.f32.gmra.mxu0 %v400
      %v512 = vpop.f32.mrf.mxu0
      %v513 = vadd.f32 0.0, %v512
      %514 = vmatmul.f32.gmra.mxu0 %v403
      %v515 = vpop.f32.mrf.mxu0
      %v516 = vadd.f32 0.0, %v515
      %517 = vmatmul.f32.gmra.mxu0 %v406
      %v518 = vpop.f32.mrf.mxu0
      %v519 = vadd.f32 0.0, %v518
      %520 = vmatmul.f32.gmra.mxu0 %v409
      %v521 = vpop.f32.mrf.mxu0
      %v522 = vadd.f32 0.0, %v521
      %523 = vmatmul.f32.gmra.mxu0 %v412
      %v524 = vpop.f32.mrf.mxu0
      %v525 = vadd.f32 0.0, %v524
      %526 = vmatmul.f32.gmra.mxu0 %v415
      %v527 = vpop.f32.mrf.mxu0
      %v528 = vadd.f32 0.0, %v527
      %529 = vmatmul.f32.gmra.mxu0 %v418
      %v530 = vpop.f32.mrf.mxu0
      %v531 = vadd.f32 0.0, %v530
      %532 = vmatmul.f32.gmra.mxu0 %v421
      %v533 = vpop.f32.mrf.mxu0
      %v534 = vadd.f32 0.0, %v533
      %535 = vdwg.mxu0
      %v536 = vadd.f32 %v256, %v441
      %v537 = vadd.f32 %v257, %v444
      %v538 = vadd.f32 %v258, %v447
      %v539 = vadd.f32 %v259, %v450
      %v540 = vadd.f32 %v260, %v453
      %v541 = vadd.f32 %v261, %v456
      %v542 = vadd.f32 %v262, %v459
      %v543 = vadd.f32 %v263, %v462
      %v544 = vadd.f32 %v264, %v465
      %v545 = vadd.f32 %v265, %v468
      %v546 = vadd.f32 %v266, %v471
      %v547 = vadd.f32 %v267, %v474
      %v548 = vadd.f32 %v268, %v477
      %v549 = vadd.f32 %v269, %v480
      %v550 = vadd.f32 %v270, %v483
      %v551 = vadd.f32 %v271, %v486
      %v552 = vadd.f32 %v272, %v489
      %v553 = vadd.f32 %v273, %v492
      %v554 = vadd.f32 %v274, %v495
      %v555 = vadd.f32 %v275, %v498
      %v556 = vadd.f32 %v276, %v501
      %v557 = vadd.f32 %v277, %v504
      %v558 = vadd.f32 %v278, %v507
      %v559 = vadd.f32 %v279, %v510
      %v560 = vadd.f32 %v280, %v513
      %v561 = vadd.f32 %v281, %v516
      %v562 = vadd.f32 %v282, %v519
      %v563 = vadd.f32 %v283, %v522
      %v564 = vadd.f32 %v284, %v525
      %v565 = vadd.f32 %v285, %v528
      %v566 = vadd.f32 %v286, %v531
      %v567 = vadd.f32 %v287, %v534
      %vm568 = vcmask 64512
      %569 = vst.msk [vmem:[#allocation2] sm:$0xff] %vm568, %v536
      %570 = vst.msk [vmem:[#allocation2 + $0x8] sm:$0xff] %vm568, %v537
      %571 = vst.msk [vmem:[#allocation2 + $0x10] sm:$0xff] %vm568, %v538
      %572 = vst.msk [vmem:[#allocation2 + $0x18] sm:$0xff] %vm568, %v539
      %573 = vst.msk [vmem:[#allocation2 + $0x20] sm:$0xff] %vm568, %v540
      %574 = vst.msk [vmem:[#allocation2 + $0x28] sm:$0xff] %vm568, %v541
      %575 = vst.msk [vmem:[#allocation2 + $0x30] sm:$0xff] %vm568, %v542
      %576 = vst.msk [vmem:[#allocation2 + $0x38] sm:$0xff] %vm568, %v543
      %577 = vst.msk [vmem:[#allocation2 + $0x40] sm:$0xff] %vm568, %v544
      %578 = vst.msk [vmem:[#allocation2 + $0x48] sm:$0xff] %vm568, %v545
      %579 = vst.msk [vmem:[#allocation2 + $0x50] sm:$0xff] %vm568, %v546
      %580 = vst.msk [vmem:[#allocation2 + $0x58] sm:$0xff] %vm568, %v547
      %581 = vst.msk [vmem:[#allocation2 + $0x60] sm:$0xff] %vm568, %v548
      %582 = vst.msk [vmem:[#allocation2 + $0x68] sm:$0xff] %vm568, %v549
      %583 = vst.msk [vmem:[#allocation2 + $0x70] sm:$0xff] %vm568, %v550
      %584 = vst.msk [vmem:[#allocation2 + $0x78] sm:$0xff] %vm568, %v551
      %585 = vst.msk [vmem:[#allocation2 + $0x80] sm:$0xff] %vm568, %v552
      %586 = vst.msk [vmem:[#allocation2 + $0x88] sm:$0xff] %vm568, %v553
      %587 = vst.msk [vmem:[#allocation2 + $0x90] sm:$0xff] %vm568, %v554
      %588 = vst.msk [vmem:[#allocation2 + $0x98] sm:$0xff] %vm568, %v555
      %589 = vst.msk [vmem:[#allocation2 + $0xa0] sm:$0xff] %vm568, %v556
      %590 = vst.msk [vmem:[#allocation2 + $0xa8] sm:$0xff] %vm568, %v557
      %591 = vst.msk [vmem:[#allocation2 + $0xb0] sm:$0xff] %vm568, %v558
      %592 = vst.msk [vmem:[#allocation2 + $0xb8] sm:$0xff] %vm568, %v559
      %593 = vst.msk [vmem:[#allocation2 + $0xc0] sm:$0xff] %vm568, %v560
      %594 = vst.msk [vmem:[#allocation2 + $0xc8] sm:$0xff] %vm568, %v561
      %595 = vst.msk [vmem:[#allocation2 + $0xd0] sm:$0xff] %vm568, %v562
      %596 = vst.msk [vmem:[#allocation2 + $0xd8] sm:$0xff] %vm568, %v563
      %597 = vst.msk [vmem:[#allocation2 + $0xe0] sm:$0xff] %vm568, %v564
      %598 = vst.msk [vmem:[#allocation2 + $0xe8] sm:$0xff] %vm568, %v565
      %599 = vst.msk [vmem:[#allocation2 + $0xf0] sm:$0xff] %vm568, %v566
      %600 = vst.msk [vmem:[#allocation2 + $0xf8] sm:$0xff] %vm568, %v567
      // Predicated region
      $region37: #{encoder_forward.7} parent=31 // pred_check
        %p601 = pneg %p219
      $region38: #{encoder_forward.7} parent=31 // pred_check_branch
        %603 = sbr.rel (%p601) target = $region40
      $region39: #{encoder_forward.7} parent=31 // pred_region
        %v604 = vld [vmem:[#allocation2] sm:$0xff]
        %v605 = vld [vmem:[#allocation2 + $0x8] sm:$0xff]
        %v606 = vld [vmem:[#allocation2 + $0x10] sm:$0xff]
        %v607 = vld [vmem:[#allocation2 + $0x18] sm:$0xff]
        %v608 = vld [vmem:[#allocation2 + $0x20] sm:$0xff]
        %v609 = vld [vmem:[#allocation2 + $0x28] sm:$0xff]
        %v610 = vld [vmem:[#allocation2 + $0x30] sm:$0xff]
        %v611 = vld [vmem:[#allocation2 + $0x38] sm:$0xff]
        %v612 = vld [vmem:[#allocation2 + $0x40] sm:$0xff]
        %v613 = vld [vmem:[#allocation2 + $0x48] sm:$0xff]
        %v614 = vld [vmem:[#allocation2 + $0x50] sm:$0xff]
        %v615 = vld [vmem:[#allocation2 + $0x58] sm:$0xff]
        %v616 = vld [vmem:[#allocation2 + $0x60] sm:$0xff]
        %v617 = vld [vmem:[#allocation2 + $0x68] sm:$0xff]
        %v618 = vld [vmem:[#allocation2 + $0x70] sm:$0xff]
        %v619 = vld [vmem:[#allocation2 + $0x78] sm:$0xff]
        %v620 = vld [vmem:[#allocation2 + $0x80] sm:$0xff]
        %v621 = vld [vmem:[#allocation2 + $0x88] sm:$0xff]
        %v622 = vld [vmem:[#allocation2 + $0x90] sm:$0xff]
        %v623 = vld [vmem:[#allocation2 + $0x98] sm:$0xff]
        %v624 = vld [vmem:[#allocation2 + $0xa0] sm:$0xff]
        %v625 = vld [vmem:[#allocation2 + $0xa8] sm:$0xff]
        %v626 = vld [vmem:[#allocation2 + $0xb0] sm:$0xff]
        %v627 = vld [vmem:[#allocation2 + $0xb8] sm:$0xff]
        %v628 = vld [vmem:[#allocation2 + $0xc0] sm:$0xff]
        %v629 = vld [vmem:[#allocation2 + $0xc8] sm:$0xff]
        %v630 = vld [vmem:[#allocation2 + $0xd0] sm:$0xff]
        %v631 = vld [vmem:[#allocation2 + $0xd8] sm:$0xff]
        %v632 = vld [vmem:[#allocation2 + $0xe0] sm:$0xff]
        %v633 = vld [vmem:[#allocation2 + $0xe8] sm:$0xff]
        %v634 = vld [vmem:[#allocation2 + $0xf0] sm:$0xff]
        %v635 = vld [vmem:[#allocation2 + $0xf8] sm:$0xff]
        %v636 = vld [vmem:[%s2] sm:$0x1]
        %v638 = vperm.slane %v636, 0
        %v640 = vadd.f32 %v604, %v638
        %v641 = vadd.f32 %v605, %v638
        %v642 = vadd.f32 %v606, %v638
        %v643 = vadd.f32 %v607, %v638
        %v644 = vadd.f32 %v608, %v638
        %v645 = vadd.f32 %v609, %v638
        %v646 = vadd.f32 %v610, %v638
        %v647 = vadd.f32 %v611, %v638
        %v648 = vadd.f32 %v612, %v638
        %v649 = vadd.f32 %v613, %v638
        %v650 = vadd.f32 %v614, %v638
        %v651 = vadd.f32 %v615, %v638
        %v652 = vadd.f32 %v616, %v638
        %v653 = vadd.f32 %v617, %v638
        %v654 = vadd.f32 %v618, %v638
        %v655 = vadd.f32 %v619, %v638
        %v656 = vadd.f32 %v620, %v638
        %v657 = vadd.f32 %v621, %v638
        %v658 = vadd.f32 %v622, %v638
        %v659 = vadd.f32 %v623, %v638
        %v660 = vadd.f32 %v624, %v638
        %v661 = vadd.f32 %v625, %v638
        %v662 = vadd.f32 %v626, %v638
        %v663 = vadd.f32 %v627, %v638
        %v664 = vadd.f32 %v628, %v638
        %v665 = vadd.f32 %v629, %v638
        %v666 = vadd.f32 %v630, %v638
        %v667 = vadd.f32 %v631, %v638
        %v668 = vadd.f32 %v632, %v638
        %v669 = vadd.f32 %v633, %v638
        %v670 = vadd.f32 %v634, %v638
        %v671 = vadd.f32 %v635, %v638
        %vm672 = vcmp.ge.f32.partialorder %v640, 0.0
        %vm673 = vcmp.ge.f32.partialorder %v641, 0.0
        %vm674 = vcmp.ge.f32.partialorder %v642, 0.0
        %vm675 = vcmp.ge.f32.partialorder %v643, 0.0
        %vm676 = vcmp.ge.f32.partialorder %v644, 0.0
        %vm677 = vcmp.ge.f32.partialorder %v645, 0.0
        %vm678 = vcmp.ge.f32.partialorder %v646, 0.0
        %vm679 = vcmp.ge.f32.partialorder %v647, 0.0
        %vm680 = vcmp.ge.f32.partialorder %v648, 0.0
        %vm681 = vcmp.ge.f32.partialorder %v649, 0.0
        %vm682 = vcmp.ge.f32.partialorder %v650, 0.0
        %vm683 = vcmp.ge.f32.partialorder %v651, 0.0
        %vm684 = vcmp.ge.f32.partialorder %v652, 0.0
        %vm685 = vcmp.ge.f32.partialorder %v653, 0.0
        %vm686 = vcmp.ge.f32.partialorder %v654, 0.0
        %vm687 = vcmp.ge.f32.partialorder %v655, 0.0
        %vm688 = vcmp.ge.f32.partialorder %v656, 0.0
        %vm689 = vcmp.ge.f32.partialorder %v657, 0.0
        %vm690 = vcmp.ge.f32.partialorder %v658, 0.0
        %vm691 = vcmp.ge.f32.partialorder %v659, 0.0
        %vm692 = vcmp.ge.f32.partialorder %v660, 0.0
        %vm693 = vcmp.ge.f32.partialorder %v661, 0.0
        %vm694 = vcmp.ge.f32.partialorder %v662, 0.0
        %vm695 = vcmp.ge.f32.partialorder %v663, 0.0
        %vm696 = vcmp.ge.f32.partialorder %v664, 0.0
        %vm697 = vcmp.ge.f32.partialorder %v665, 0.0
        %vm698 = vcmp.ge.f32.partialorder %v666, 0.0
        %vm699 = vcmp.ge.f32.partialorder %v667, 0.0
        %vm700 = vcmp.ge.f32.partialorder %v668, 0.0
        %vm701 = vcmp.ge.f32.partialorder %v669, 0.0
        %vm702 = vcmp.ge.f32.partialorder %v670, 0.0
        %vm703 = vcmp.ge.f32.partialorder %v671, 0.0
        %v704 = vmul.f32 %v640, 0.2
        %v705 = vmul.f32 %v641, 0.2
        %v706 = vmul.f32 %v642, 0.2
        %v707 = vmul.f32 %v643, 0.2
        %v708 = vmul.f32 %v644, 0.2
        %v709 = vmul.f32 %v645, 0.2
        %v710 = vmul.f32 %v646, 0.2
        %v711 = vmul.f32 %v647, 0.2
        %v712 = vmul.f32 %v648, 0.2
        %v713 = vmul.f32 %v649, 0.2
        %v714 = vmul.f32 %v650, 0.2
        %v715 = vmul.f32 %v651, 0.2
        %v716 = vmul.f32 %v652, 0.2
        %v717 = vmul.f32 %v653, 0.2
        %v718 = vmul.f32 %v654, 0.2
        %v719 = vmul.f32 %v655, 0.2
        %v720 = vmul.f32 %v656, 0.2
        %v721 = vmul.f32 %v657, 0.2
        %v722 = vmul.f32 %v658, 0.2
        %v723 = vmul.f32 %v659, 0.2
        %v724 = vmul.f32 %v660, 0.2
        %v725 = vmul.f32 %v661, 0.2
        %v726 = vmul.f32 %v662, 0.2
        %v727 = vmul.f32 %v663, 0.2
        %v728 = vmul.f32 %v664, 0.2
        %v729 = vmul.f32 %v665, 0.2
        %v730 = vmul.f32 %v666, 0.2
        %v731 = vmul.f32 %v667, 0.2
        %v732 = vmul.f32 %v668, 0.2
        %v733 = vmul.f32 %v669, 0.2
        %v734 = vmul.f32 %v670, 0.2
        %v735 = vmul.f32 %v671, 0.2
        %v736 = vsel %vm672, %v640, %v704
        %v737 = vsel %vm673, %v641, %v705
        %v738 = vsel %vm674, %v642, %v706
        %v739 = vsel %vm675, %v643, %v707
        %v740 = vsel %vm676, %v644, %v708
        %v741 = vsel %vm677, %v645, %v709
        %v742 = vsel %vm678, %v646, %v710
        %v743 = vsel %vm679, %v647, %v711
        %v744 = vsel %vm680, %v648, %v712
        %v745 = vsel %vm681, %v649, %v713
        %v746 = vsel %vm682, %v650, %v714
        %v747 = vsel %vm683, %v651, %v715
        %v748 = vsel %vm684, %v652, %v716
        %v749 = vsel %vm685, %v653, %v717
        %v750 = vsel %vm686, %v654, %v718
        %v751 = vsel %vm687, %v655, %v719
        %v752 = vsel %vm688, %v656, %v720
        %v753 = vsel %vm689, %v657, %v721
        %v754 = vsel %vm690, %v658, %v722
        %v755 = vsel %vm691, %v659, %v723
        %v756 = vsel %vm692, %v660, %v724
        %v757 = vsel %vm693, %v661, %v725
        %v758 = vsel %vm694, %v662, %v726
        %v759 = vsel %vm695, %v663, %v727
        %v760 = vsel %vm696, %v664, %v728
        %v761 = vsel %vm697, %v665, %v729
        %v762 = vsel %vm698, %v666, %v730
        %v763 = vsel %vm699, %v667, %v731
        %v764 = vsel %vm700, %v668, %v732
        %v765 = vsel %vm701, %v669, %v733
        %v766 = vsel %vm702, %v670, %v734
        %v767 = vsel %vm703, %v671, %v735
        %768 = vst.msk [vmem:[%s217] sm:$0xff] %vm568, %v736
        %769 = vst.msk [vmem:[%s217 + $0x8] sm:$0xff] %vm568, %v737
        %770 = vst.msk [vmem:[%s217 + $0x10] sm:$0xff] %vm568, %v738
        %771 = vst.msk [vmem:[%s217 + $0x18] sm:$0xff] %vm568, %v739
        %772 = vst.msk [vmem:[%s217 + $0x20] sm:$0xff] %vm568, %v740
        %773 = vst.msk [vmem:[%s217 + $0x28] sm:$0xff] %vm568, %v741
        %774 = vst.msk [vmem:[%s217 + $0x30] sm:$0xff] %vm568, %v742
        %775 = vst.msk [vmem:[%s217 + $0x38] sm:$0xff] %vm568, %v743
        %776 = vst.msk [vmem:[%s217 + $0x40] sm:$0xff] %vm568, %v744
        %777 = vst.msk [vmem:[%s217 + $0x48] sm:$0xff] %vm568, %v745
        %778 = vst.msk [vmem:[%s217 + $0x50] sm:$0xff] %vm568, %v746
        %779 = vst.msk [vmem:[%s217 + $0x58] sm:$0xff] %vm568, %v747
        %780 = vst.msk [vmem:[%s217 + $0x60] sm:$0xff] %vm568, %v748
        %781 = vst.msk [vmem:[%s217 + $0x68] sm:$0xff] %vm568, %v749
        %782 = vst.msk [vmem:[%s217 + $0x70] sm:$0xff] %vm568, %v750
        %783 = vst.msk [vmem:[%s217 + $0x78] sm:$0xff] %vm568, %v751
        %784 = vst.msk [vmem:[%s217 + $0x80] sm:$0xff] %vm568, %v752
        %785 = vst.msk [vmem:[%s217 + $0x88] sm:$0xff] %vm568, %v753
        %786 = vst.msk [vmem:[%s217 + $0x90] sm:$0xff] %vm568, %v754
        %787 = vst.msk [vmem:[%s217 + $0x98] sm:$0xff] %vm568, %v755
        %788 = vst.msk [vmem:[%s217 + $0xa0] sm:$0xff] %vm568, %v756
        %789 = vst.msk [vmem:[%s217 + $0xa8] sm:$0xff] %vm568, %v757
        %790 = vst.msk [vmem:[%s217 + $0xb0] sm:$0xff] %vm568, %v758
        %791 = vst.msk [vmem:[%s217 + $0xb8] sm:$0xff] %vm568, %v759
        %792 = vst.msk [vmem:[%s217 + $0xc0] sm:$0xff] %vm568, %v760
        %793 = vst.msk [vmem:[%s217 + $0xc8] sm:$0xff] %vm568, %v761
        %794 = vst.msk [vmem:[%s217 + $0xd0] sm:$0xff] %vm568, %v762
        %795 = vst.msk [vmem:[%s217 + $0xd8] sm:$0xff] %vm568, %v763
        %796 = vst.msk [vmem:[%s217 + $0xe0] sm:$0xff] %vm568, %v764
        %797 = vst.msk [vmem:[%s217 + $0xe8] sm:$0xff] %vm568, %v765
        %798 = vst.msk [vmem:[%s217 + $0xf0] sm:$0xff] %vm568, %v766
        %799 = vst.msk [vmem:[%s217 + $0xf8] sm:$0xff] %vm568, %v767
      $region40: #{encoder_forward.7} parent=31 // pred_fallthru
        _
      %s800 = smul.u32 32, %s18
      %p801 = scmp.lt.s32.totalorder %s800, 63
      %s802 = scalar_select %p801, %s800, 63
      %s803 = smul.addr %s802, 8
      %s804 = scalar_lea.vmem %s3, %s803
      // Predicated region
      $region41: #{encoder_forward.7} parent=31 // pred_check
        %p805 = pneg %p119
      $region42: #{encoder_forward.7} parent=31 // pred_check_branch
        %807 = sbr.rel (%p805) target = $region44
      $region43: #{encoder_forward.7} parent=31 // pred_region
        %s808 = smul.u32 32, %s18
      $region44: #{encoder_forward.7} parent=31 // pred_fallthru
        _
    $region32: #{encoder_forward.7} parent=5 // pred_fallthru
      _
    %p809 = scmp.le.s32.totalorder 2, %s9
    // Predicated region
    $region45: #{encoder_forward.7} parent=5 // pred_check
      %p810 = pneg %p809
    $region46: #{encoder_forward.7} parent=5 // pred_check_branch
      %812 = sbr.rel (%p810) target = $region48
    $region47: #{encoder_forward.7} parent=5 // pred_region
      %s813 = ssub.s32 %s9, 2
      // Predicated region
      $region49: #{encoder_forward.7} parent=47 // pred_check
        %p814 = pneg %p125
      $region50: #{encoder_forward.7} parent=47 // pred_check_branch
        %816 = sbr.rel (%p814) target = $region52
      $region51: #{encoder_forward.7} parent=47 // pred_region
        %s817 = smul.u32 32, %s20
        %p818 = scmp.lt.s32.totalorder %s817, 63
        %s819 = scalar_select %p818, %s817, 63
        %s820 = smul.addr %s819, 8
        %s821 = scalar_lea.vmem %s3, %s820
      $region52: #{encoder_forward.7} parent=47 // pred_fallthru
        _
    $region48: #{encoder_forward.7} parent=5 // pred_fallthru
      _
  $region6: #{encoder_forward.7} parent=0 // loop_footer
    %s13 = sadd.s32 1, %s9
  $region7: #{encoder_forward.7} parent=0 // loop_footer_branch
    %8 = sbr.rel target = $region3
  $region8: #{encoder_forward.7} parent=0 // loop_exit
    _

// kernel: encoder_forward.8
$region0: #{encoder_forward.8}
  #allocation0 [shape = 'u32[]', space=smem, size = 0x4, offset = 0x4, fixed_abs, tag = 'smem constant byte address 0x4 - core index']
  #allocation1 [shape = 'u32[72,128]{1,0:T(1,128)}', space=vmem, size = 0x9000, scoped, tag = 'internal scratch']
  #allocation2 [shape = 'f32[128,16]{1,0:T(8,128)}', space=vmem, size = 0x10000, scoped, tag = 'scratch operand']
  %s0 = inlined_call_operand.vmem [shape: f32[128,128], index: 0, kind: input, shape index: {}]
  %s1 = inlined_call_operand.vmem [shape: f32[128,16], index: 1, kind: input, shape index: {}]
  %s2 = inlined_call_operand.vmem [shape: f32[128,16], index: 2, kind: output, shape index: {0}]
  %s3 = inlined_call_operand.vmem [shape: f32[1,1,16], index: 3, kind: output, shape index: {1}]
  %s4 = inlined_call_operand.vmem [shape: f32[1,1,16], index: 4, kind: output, shape index: {2}]
  %5 = xla_tuple %s2, %s3, %s4
  %s6 = sld [smem:[#allocation0]]
  $region42: #{encoder_forward.8} parent=0
    _
  %s8 = ssub.s32 1, %s6
  %s9 = scalar_select 0, %s8, %s6
  // Predicated region
  $region2: #{encoder_forward.8} parent=0 // pred_check
    _
  $region3: #{encoder_forward.8} parent=0 // pred_check_branch
    %11 = sbr.rel (0) target = $region5
  $region4: #{encoder_forward.8} parent=0 // pred_region
    _
  $region5: #{encoder_forward.8} parent=0 // pred_fallthru
    _
  // Predicated region
  $region6: #{encoder_forward.8} parent=0 // pred_check
    _
  $region7: #{encoder_forward.8} parent=0 // pred_check_branch
    %13 = sbr.rel (0) target = $region9
  $region8: #{encoder_forward.8} parent=0 // pred_region
    _
  $region9: #{encoder_forward.8} parent=0 // pred_fallthru
    _
  %p14 = scmp.eq.s32.totalorder 0, 0
  // Predicated region
  $region10: #{encoder_forward.8} parent=0 // pred_check
    %p15 = pneg %p14
  $region11: #{encoder_forward.8} parent=0 // pred_check_branch
    %17 = sbr.rel (%p15) target = $region13
  $region12: #{encoder_forward.8} parent=0 // pred_region
    %vm18 = vcmask 130048
    %19 = vst.msk [vmem:[#allocation2] sm:$0xff] %vm18, 0.0
    %20 = vst.msk [vmem:[#allocation2 + $0x8] sm:$0xff] %vm18, 0.0
    %21 = vst.msk [vmem:[#allocation2 + $0x10] sm:$0xff] %vm18, 0.0
    %22 = vst.msk [vmem:[#allocation2 + $0x18] sm:$0xff] %vm18, 0.0
    %23 = vst.msk [vmem:[#allocation2 + $0x20] sm:$0xff] %vm18, 0.0
    %24 = vst.msk [vmem:[#allocation2 + $0x28] sm:$0xff] %vm18, 0.0
    %25 = vst.msk [vmem:[#allocation2 + $0x30] sm:$0xff] %vm18, 0.0
    %26 = vst.msk [vmem:[#allocation2 + $0x38] sm:$0xff] %vm18, 0.0
    %27 = vst.msk [vmem:[#allocation2 + $0x40] sm:$0xff] %vm18, 0.0
    %28 = vst.msk [vmem:[#allocation2 + $0x48] sm:$0xff] %vm18, 0.0
    %29 = vst.msk [vmem:[#allocation2 + $0x50] sm:$0xff] %vm18, 0.0
    %30 = vst.msk [vmem:[#allocation2 + $0x58] sm:$0xff] %vm18, 0.0
    %31 = vst.msk [vmem:[#allocation2 + $0x60] sm:$0xff] %vm18, 0.0
    %32 = vst.msk [vmem:[#allocation2 + $0x68] sm:$0xff] %vm18, 0.0
    %33 = vst.msk [vmem:[#allocation2 + $0x70] sm:$0xff] %vm18, 0.0
    %34 = vst.msk [vmem:[#allocation2 + $0x78] sm:$0xff] %vm18, 0.0
  $region13: #{encoder_forward.8} parent=0 // pred_fallthru
    _
  %v35 = vld [vmem:[#allocation2] sm:$0xff]
  %v36 = vld [vmem:[#allocation2 + $0x8] sm:$0xff]
  %v37 = vld [vmem:[#allocation2 + $0x10] sm:$0xff]
  %v38 = vld [vmem:[#allocation2 + $0x18] sm:$0xff]
  %v39 = vld [vmem:[#allocation2 + $0x20] sm:$0xff]
  %v40 = vld [vmem:[#allocation2 + $0x28] sm:$0xff]
  %v41 = vld [vmem:[#allocation2 + $0x30] sm:$0xff]
  %v42 = vld [vmem:[#allocation2 + $0x38] sm:$0xff]
  %v43 = vld [vmem:[#allocation2 + $0x40] sm:$0xff]
  %v44 = vld [vmem:[#allocation2 + $0x48] sm:$0xff]
  %v45 = vld [vmem:[#allocation2 + $0x50] sm:$0xff]
  %v46 = vld [vmem:[#allocation2 + $0x58] sm:$0xff]
  %v47 = vld [vmem:[#allocation2 + $0x60] sm:$0xff]
  %v48 = vld [vmem:[#allocation2 + $0x68] sm:$0xff]
  %v49 = vld [vmem:[#allocation2 + $0x70] sm:$0xff]
  %v50 = vld [vmem:[#allocation2 + $0x78] sm:$0xff]
  %v51 = vld [vmem:[%s0] sm:$0xff]
  %v52 = vld [vmem:[%s0 + $0x8] sm:$0xff]
  %v53 = vld [vmem:[%s0 + $0x10] sm:$0xff]
  %v54 = vld [vmem:[%s0 + $0x18] sm:$0xff]
  %v55 = vld [vmem:[%s0 + $0x20] sm:$0xff]
  %v56 = vld [vmem:[%s0 + $0x28] sm:$0xff]
  %v57 = vld [vmem:[%s0 + $0x30] sm:$0xff]
  %v58 = vld [vmem:[%s0 + $0x38] sm:$0xff]
  %v59 = vld [vmem:[%s0 + $0x40] sm:$0xff]
  %v60 = vld [vmem:[%s0 + $0x48] sm:$0xff]
  %v61 = vld [vmem:[%s0 + $0x50] sm:$0xff]
  %v62 = vld [vmem:[%s0 + $0x58] sm:$0xff]
  %v63 = vld [vmem:[%s0 + $0x60] sm:$0xff]
  %v64 = vld [vmem:[%s0 + $0x68] sm:$0xff]
  %v65 = vld [vmem:[%s0 + $0x70] sm:$0xff]
  %v66 = vld [vmem:[%s0 + $0x78] sm:$0xff]
  %v67 = vld [vmem:[%s1] sm:$0xff]
  %v68 = vld [vmem:[%s1 + $0x8] sm:$0xff]
  %v69 = vld [vmem:[%s1 + $0x10] sm:$0xff]
  %v70 = vld [vmem:[%s1 + $0x18] sm:$0xff]
  %v71 = vld [vmem:[%s1 + $0x20] sm:$0xff]
  %v72 = vld [vmem:[%s1 + $0x28] sm:$0xff]
  %v73 = vld [vmem:[%s1 + $0x30] sm:$0xff]
  %v74 = vld [vmem:[%s1 + $0x38] sm:$0xff]
  %v75 = vld [vmem:[%s1 + $0x40] sm:$0xff]
  %v76 = vld [vmem:[%s1 + $0x48] sm:$0xff]
  %v77 = vld [vmem:[%s1 + $0x50] sm:$0xff]
  %v78 = vld [vmem:[%s1 + $0x58] sm:$0xff]
  %v79 = vld [vmem:[%s1 + $0x60] sm:$0xff]
  %v80 = vld [vmem:[%s1 + $0x68] sm:$0xff]
  %v81 = vld [vmem:[%s1 + $0x70] sm:$0xff]
  %v82 = vld [vmem:[%s1 + $0x78] sm:$0xff]
  %83 = vmatpush.msra.mxu0 %v82
  %84 = vmatpush.msra.mxu0 %v81
  %85 = vmatpush.msra.mxu0 %v80
  %86 = vmatpush.msra.mxu0 %v79
  %87 = vmatpush.msra.mxu0 %v78
  %88 = vmatpush.msra.mxu0 %v77
  %89 = vmatpush.msra.mxu0 %v76
  %90 = vmatpush.msra.mxu0 %v75
  %91 = vmatpush.msra.mxu0 %v74
  %92 = vmatpush.msra.mxu0 %v73
  %93 = vmatpush.msra.mxu0 %v72
  %94 = vmatpush.msra.mxu0 %v71
  %95 = vmatpush.msra.mxu0 %v70
  %96 = vmatpush.msra.mxu0 %v69
  %97 = vmatpush.msra.mxu0 %v68
  %98 = vmatpush.msra.mxu0 %v67
  %99 = vmatmul.f32.gmra.mxu0 %v51
  %v100 = vpop.f32.mrf.mxu0
  %v101 = vadd.f32 0.0, %v100
  %102 = vmatmul.f32.gmra.mxu0 %v52
  %v103 = vpop.f32.mrf.mxu0
  %v104 = vadd.f32 0.0, %v103
  %105 = vmatmul.f32.gmra.mxu0 %v53
  %v106 = vpop.f32.mrf.mxu0
  %v107 = vadd.f32 0.0, %v106
  %108 = vmatmul.f32.gmra.mxu0 %v54
  %v109 = vpop.f32.mrf.mxu0
  %v110 = vadd.f32 0.0, %v109
  %111 = vmatmul.f32.gmra.mxu0 %v55
  %v112 = vpop.f32.mrf.mxu0
  %v113 = vadd.f32 0.0, %v112
  %114 = vmatmul.f32.gmra.mxu0 %v56
  %v115 = vpop.f32.mrf.mxu0
  %v116 = vadd.f32 0.0, %v115
  %117 = vmatmul.f32.gmra.mxu0 %v57
  %v118 = vpop.f32.mrf.mxu0
  %v119 = vadd.f32 0.0, %v118
  %120 = vmatmul.f32.gmra.mxu0 %v58
  %v121 = vpop.f32.mrf.mxu0
  %v122 = vadd.f32 0.0, %v121
  %123 = vmatmul.f32.gmra.mxu0 %v59
  %v124 = vpop.f32.mrf.mxu0
  %v125 = vadd.f32 0.0, %v124
  %126 = vmatmul.f32.gmra.mxu0 %v60
  %v127 = vpop.f32.mrf.mxu0
  %v128 = vadd.f32 0.0, %v127
  %129 = vmatmul.f32.gmra.mxu0 %v61
  %v130 = vpop.f32.mrf.mxu0
  %v131 = vadd.f32 0.0, %v130
  %132 = vmatmul.f32.gmra.mxu0 %v62
  %v133 = vpop.f32.mrf.mxu0
  %v134 = vadd.f32 0.0, %v133
  %135 = vmatmul.f32.gmra.mxu0 %v63
  %v136 = vpop.f32.mrf.mxu0
  %v137 = vadd.f32 0.0, %v136
  %138 = vmatmul.f32.gmra.mxu0 %v64
  %v139 = vpop.f32.mrf.mxu0
  %v140 = vadd.f32 0.0, %v139
  %141 = vmatmul.f32.gmra.mxu0 %v65
  %v142 = vpop.f32.mrf.mxu0
  %v143 = vadd.f32 0.0, %v142
  %144 = vmatmul.f32.gmra.mxu0 %v66
  %v145 = vpop.f32.mrf.mxu0
  %v146 = vadd.f32 0.0, %v145
  %147 = vdwg.mxu0
  %v148 = vadd.f32 %v35, %v101
  %v149 = vadd.f32 %v36, %v104
  %v150 = vadd.f32 %v37, %v107
  %v151 = vadd.f32 %v38, %v110
  %v152 = vadd.f32 %v39, %v113
  %v153 = vadd.f32 %v40, %v116
  %v154 = vadd.f32 %v41, %v119
  %v155 = vadd.f32 %v42, %v122
  %v156 = vadd.f32 %v43, %v125
  %v157 = vadd.f32 %v44, %v128
  %v158 = vadd.f32 %v45, %v131
  %v159 = vadd.f32 %v46, %v134
  %v160 = vadd.f32 %v47, %v137
  %v161 = vadd.f32 %v48, %v140
  %v162 = vadd.f32 %v49, %v143
  %v163 = vadd.f32 %v50, %v146
  %vm164 = vcmask 130048
  %165 = vst.msk [vmem:[#allocation2] sm:$0xff] %vm164, %v148
  %166 = vst.msk [vmem:[#allocation2 + $0x8] sm:$0xff] %vm164, %v149
  %167 = vst.msk [vmem:[#allocation2 + $0x10] sm:$0xff] %vm164, %v150
  %168 = vst.msk [vmem:[#allocation2 + $0x18] sm:$0xff] %vm164, %v151
  %169 = vst.msk [vmem:[#allocation2 + $0x20] sm:$0xff] %vm164, %v152
  %170 = vst.msk [vmem:[#allocation2 + $0x28] sm:$0xff] %vm164, %v153
  %171 = vst.msk [vmem:[#allocation2 + $0x30] sm:$0xff] %vm164, %v154
  %172 = vst.msk [vmem:[#allocation2 + $0x38] sm:$0xff] %vm164, %v155
  %173 = vst.msk [vmem:[#allocation2 + $0x40] sm:$0xff] %vm164, %v156
  %174 = vst.msk [vmem:[#allocation2 + $0x48] sm:$0xff] %vm164, %v157
  %175 = vst.msk [vmem:[#allocation2 + $0x50] sm:$0xff] %vm164, %v158
  %176 = vst.msk [vmem:[#allocation2 + $0x58] sm:$0xff] %vm164, %v159
  %177 = vst.msk [vmem:[#allocation2 + $0x60] sm:$0xff] %vm164, %v160
  %178 = vst.msk [vmem:[#allocation2 + $0x68] sm:$0xff] %vm164, %v161
  %179 = vst.msk [vmem:[#allocation2 + $0x70] sm:$0xff] %vm164, %v162
  %180 = vst.msk [vmem:[#allocation2 + $0x78] sm:$0xff] %vm164, %v163
  // Predicated region
  $region14: #{encoder_forward.8} parent=0 // pred_check
    %p181 = pneg %p14
  $region15: #{encoder_forward.8} parent=0 // pred_check_branch
    %183 = sbr.rel (%p181) target = $region17
  $region16: #{encoder_forward.8} parent=0 // pred_region
    %v184 = vld [vmem:[#allocation2] sm:$0xff]
    %v185 = vld [vmem:[#allocation2 + $0x8] sm:$0xff]
    %v186 = vld [vmem:[#allocation2 + $0x10] sm:$0xff]
    %v187 = vld [vmem:[#allocation2 + $0x18] sm:$0xff]
    %v188 = vld [vmem:[#allocation2 + $0x20] sm:$0xff]
    %v189 = vld [vmem:[#allocation2 + $0x28] sm:$0xff]
    %v190 = vld [vmem:[#allocation2 + $0x30] sm:$0xff]
    %v191 = vld [vmem:[#allocation2 + $0x38] sm:$0xff]
    %v192 = vld [vmem:[#allocation2 + $0x40] sm:$0xff]
    %v193 = vld [vmem:[#allocation2 + $0x48] sm:$0xff]
    %v194 = vld [vmem:[#allocation2 + $0x50] sm:$0xff]
    %v195 = vld [vmem:[#allocation2 + $0x58] sm:$0xff]
    %v196 = vld [vmem:[#allocation2 + $0x60] sm:$0xff]
    %v197 = vld [vmem:[#allocation2 + $0x68] sm:$0xff]
    %v198 = vld [vmem:[#allocation2 + $0x70] sm:$0xff]
    %v199 = vld [vmem:[#allocation2 + $0x78] sm:$0xff]
    %200 = vst.msk [vmem:[%s2] sm:$0xff] %vm164, %v184
    %201 = vst.msk [vmem:[%s2 + $0x8] sm:$0xff] %vm164, %v185
    %202 = vst.msk [vmem:[%s2 + $0x10] sm:$0xff] %vm164, %v186
    %203 = vst.msk [vmem:[%s2 + $0x18] sm:$0xff] %vm164, %v187
    %204 = vst.msk [vmem:[%s2 + $0x20] sm:$0xff] %vm164, %v188
    %205 = vst.msk [vmem:[%s2 + $0x28] sm:$0xff] %vm164, %v189
    %206 = vst.msk [vmem:[%s2 + $0x30] sm:$0xff] %vm164, %v190
    %207 = vst.msk [vmem:[%s2 + $0x38] sm:$0xff] %vm164, %v191
    %208 = vst.msk [vmem:[%s2 + $0x40] sm:$0xff] %vm164, %v192
    %209 = vst.msk [vmem:[%s2 + $0x48] sm:$0xff] %vm164, %v193
    %210 = vst.msk [vmem:[%s2 + $0x50] sm:$0xff] %vm164, %v194
    %211 = vst.msk [vmem:[%s2 + $0x58] sm:$0xff] %vm164, %v195
    %212 = vst.msk [vmem:[%s2 + $0x60] sm:$0xff] %vm164, %v196
    %213 = vst.msk [vmem:[%s2 + $0x68] sm:$0xff] %vm164, %v197
    %214 = vst.msk [vmem:[%s2 + $0x70] sm:$0xff] %vm164, %v198
    %215 = vst.msk [vmem:[%s2 + $0x78] sm:$0xff] %vm164, %v199
    %v216 = vsel %vm164, %v184, 0.0
    %v217 = vsel %vm164, %v185, 0.0
    %v218 = vadd.f32 %v216, %v217
    %v219 = vsel %vm164, %v186, 0.0
    %v220 = vadd.f32 %v218, %v219
    %v221 = vsel %vm164, %v187, 0.0
    %v222 = vadd.f32 %v220, %v221
    %v223 = vsel %vm164, %v188, 0.0
    %v224 = vadd.f32 %v222, %v223
    %v225 = vsel %vm164, %v189, 0.0
    %v226 = vadd.f32 %v224, %v225
    %v227 = vsel %vm164, %v190, 0.0
    %v228 = vadd.f32 %v226, %v227
    %v229 = vsel %vm164, %v191, 0.0
    %v230 = vadd.f32 %v228, %v229
    %v231 = vsel %vm164, %v192, 0.0
    %v232 = vadd.f32 %v230, %v231
    %v233 = vsel %vm164, %v193, 0.0
    %v234 = vadd.f32 %v232, %v233
    %v235 = vsel %vm164, %v194, 0.0
    %v236 = vadd.f32 %v234, %v235
    %v237 = vsel %vm164, %v195, 0.0
    %v238 = vadd.f32 %v236, %v237
    %v239 = vsel %vm164, %v196, 0.0
    %v240 = vadd.f32 %v238, %v239
    %v241 = vsel %vm164, %v197, 0.0
    %v242 = vadd.f32 %v240, %v241
    %v243 = vsel %vm164, %v198, 0.0
    %v244 = vadd.f32 %v242, %v243
    %v245 = vsel %vm164, %v199, 0.0
    %v246 = vadd.f32 %v244, %v245
    %v247 = vrot.slane %v246, 4
    %v248 = vadd.f32 %v246, %v247
    %v249 = vrot.slane %v248, 2
    %v250 = vadd.f32 %v248, %v249
    %v251 = vrot.slane %v250, 1
    %v252 = vadd.f32 %v250, %v251
    %vm253 = vcmask 122880
    %254 = vst.msk [vmem:[%s3] sm:$0x1] %vm253, %v252
    %v255 = vmul.f32 %v184, %v184
    %v256 = vmul.f32 %v185, %v185
    %v257 = vmul.f32 %v186, %v186
    %v258 = vmul.f32 %v187, %v187
    %v259 = vmul.f32 %v188, %v188
    %v260 = vmul.f32 %v189, %v189
    %v261 = vmul.f32 %v190, %v190
    %v262 = vmul.f32 %v191, %v191
    %v263 = vmul.f32 %v192, %v192
    %v264 = vmul.f32 %v193, %v193
    %v265 = vmul.f32 %v194, %v194
    %v266 = vmul.f32 %v195, %v195
    %v267 = vmul.f32 %v196, %v196
    %v268 = vmul.f32 %v197, %v197
    %v269 = vmul.f32 %v198, %v198
    %v270 = vmul.f32 %v199, %v199
    %v271 = vsel %vm164, %v255, 0.0
    %v272 = vsel %vm164, %v256, 0.0
    %v273 = vadd.f32 %v271, %v272
    %v274 = vsel %vm164, %v257, 0.0
    %v275 = vadd.f32 %v273, %v274
    %v276 = vsel %vm164, %v258, 0.0
    %v277 = vadd.f32 %v275, %v276
    %v278 = vsel %vm164, %v259, 0.0
    %v279 = vadd.f32 %v277, %v278
    %v280 = vsel %vm164, %v260, 0.0
    %v281 = vadd.f32 %v279, %v280
    %v282 = vsel %vm164, %v261, 0.0
    %v283 = vadd.f32 %v281, %v282
    %v284 = vsel %vm164, %v262, 0.0
    %v285 = vadd.f32 %v283, %v284
    %v286 = vsel %vm164, %v263, 0.0
    %v287 = vadd.f32 %v285, %v286
    %v288 = vsel %vm164, %v264, 0.0
    %v289 = vadd.f32 %v287, %v288
    %v290 = vsel %vm164, %v265, 0.0
    %v291 = vadd.f32 %v289, %v290
    %v292 = vsel %vm164, %v266, 0.0
    %v293 = vadd.f32 %v291, %v292
    %v294 = vsel %vm164, %v267, 0.0
    %v295 = vadd.f32 %v293, %v294
    %v296 = vsel %vm164, %v268, 0.0
    %v297 = vadd.f32 %v295, %v296
    %v298 = vsel %vm164, %v269, 0.0
    %v299 = vadd.f32 %v297, %v298
    %v300 = vsel %vm164, %v270, 0.0
    %v301 = vadd.f32 %v299, %v300
    %v302 = vrot.slane %v301, 4
    %v303 = vadd.f32 %v301, %v302
    %v304 = vrot.slane %v303, 2
    %v305 = vadd.f32 %v303, %v304
    %v306 = vrot.slane %v305, 1
    %v307 = vadd.f32 %v305, %v306
    %308 = vst.msk [vmem:[%s4] sm:$0x1] %vm253, %v307
  $region17: #{encoder_forward.8} parent=0 // pred_fallthru
    _
  // Predicated region
  $region18: #{encoder_forward.8} parent=0 // pred_check
    _
  $region19: #{encoder_forward.8} parent=0 // pred_check_branch
    %310 = sbr.rel (0) target = $region21
  $region20: #{encoder_forward.8} parent=0 // pred_region
    _
  $region21: #{encoder_forward.8} parent=0 // pred_fallthru
    _
  // Predicated region
  $region22: #{encoder_forward.8} parent=0 // pred_check
    _
  $region23: #{encoder_forward.8} parent=0 // pred_check_branch
    %312 = sbr.rel (0) target = $region25
  $region24: #{encoder_forward.8} parent=0 // pred_region
    _
  $region25: #{encoder_forward.8} parent=0 // pred_fallthru
    _
  // Predicated region
  $region26: #{encoder_forward.8} parent=0 // pred_check
    _
  $region27: #{encoder_forward.8} parent=0 // pred_check_branch
    %314 = sbr.rel (0) target = $region29
  $region28: #{encoder_forward.8} parent=0 // pred_region
    _
  $region29: #{encoder_forward.8} parent=0 // pred_fallthru
    _
  // Predicated region
  $region30: #{encoder_forward.8} parent=0 // pred_check
    _
  $region31: #{encoder_forward.8} parent=0 // pred_check_branch
    %316 = sbr.rel (0) target = $region33
  $region32: #{encoder_forward.8} parent=0 // pred_region
    _
  $region33: #{encoder_forward.8} parent=0 // pred_fallthru
    _
  // Predicated region
  $region34: #{encoder_forward.8} parent=0 // pred_check
    _
  $region35: #{encoder_forward.8} parent=0 // pred_check_branch
    %318 = sbr.rel (0) target = $region37
  $region36: #{encoder_forward.8} parent=0 // pred_region
    _
  $region37: #{encoder_forward.8} parent=0 // pred_fallthru
    _
  // Predicated region
  $region38: #{encoder_forward.8} parent=0 // pred_check
    _
  $region39: #{encoder_forward.8} parent=0 // pred_check_branch
    %320 = sbr.rel (0) target = $region41
  $region40: #{encoder_forward.8} parent=0 // pred_region
    _
  $region41: #{encoder_forward.8} parent=0 // pred_fallthru
    _

// kernel: encoder_forward.9
$region0: #{encoder_forward.9}
  #allocation0 [shape = 'u32[]', space=smem, size = 0x4, offset = 0x4, fixed_abs, tag = 'smem constant byte address 0x4 - core index']
  #allocation1 [shape = 'u32[72,128]{1,0:T(1,128)}', space=vmem, size = 0x9000, scoped, tag = 'internal scratch']
  %s0 = inlined_call_operand.vmem [shape: f32[128,16], index: 0, kind: input, shape index: {}]
  %s1 = inlined_call_operand.vmem [shape: f32[1,16], index: 1, kind: input, shape index: {}]
  %s2 = inlined_call_operand.vmem [shape: f32[1,16], index: 2, kind: input, shape index: {}]
  %s3 = inlined_call_operand.vmem [shape: f32[128,16], index: 3, kind: output, shape index: {}]
  %s4 = sld [smem:[#allocation0]]
  $region22: #{encoder_forward.9} parent=0
    _
  %s6 = ssub.s32 1, %s4
  %s7 = scalar_select 0, %s6, %s4
  // Predicated region
  $region2: #{encoder_forward.9} parent=0 // pred_check
    _
  $region3: #{encoder_forward.9} parent=0 // pred_check_branch
    %9 = sbr.rel (0) target = $region5
  $region4: #{encoder_forward.9} parent=0 // pred_region
    _
  $region5: #{encoder_forward.9} parent=0 // pred_fallthru
    _
  // Predicated region
  $region6: #{encoder_forward.9} parent=0 // pred_check
    _
  $region7: #{encoder_forward.9} parent=0 // pred_check_branch
    %11 = sbr.rel (0) target = $region9
  $region8: #{encoder_forward.9} parent=0 // pred_region
    _
  $region9: #{encoder_forward.9} parent=0 // pred_fallthru
    _
  // Predicated region
  $region10: #{encoder_forward.9} parent=0 // pred_check
    _
  $region11: #{encoder_forward.9} parent=0 // pred_check_branch
    %13 = sbr.rel (0) target = $region13
  $region12: #{encoder_forward.9} parent=0 // pred_region
    _
  $region13: #{encoder_forward.9} parent=0 // pred_fallthru
    _
  %v14 = vld [vmem:[%s0] sm:$0xff]
  %v15 = vld [vmem:[%s0 + $0x8] sm:$0xff]
  %v16 = vld [vmem:[%s0 + $0x10] sm:$0xff]
  %v17 = vld [vmem:[%s0 + $0x18] sm:$0xff]
  %v18 = vld [vmem:[%s0 + $0x20] sm:$0xff]
  %v19 = vld [vmem:[%s0 + $0x28] sm:$0xff]
  %v20 = vld [vmem:[%s0 + $0x30] sm:$0xff]
  %v21 = vld [vmem:[%s0 + $0x38] sm:$0xff]
  %v22 = vld [vmem:[%s0 + $0x40] sm:$0xff]
  %v23 = vld [vmem:[%s0 + $0x48] sm:$0xff]
  %v24 = vld [vmem:[%s0 + $0x50] sm:$0xff]
  %v25 = vld [vmem:[%s0 + $0x58] sm:$0xff]
  %v26 = vld [vmem:[%s0 + $0x60] sm:$0xff]
  %v27 = vld [vmem:[%s0 + $0x68] sm:$0xff]
  %v28 = vld [vmem:[%s0 + $0x70] sm:$0xff]
  %v29 = vld [vmem:[%s0 + $0x78] sm:$0xff]
  %v30 = vld [vmem:[%s1] sm:$0x1]
  %v32 = vperm.slane %v30, 0
  %v34 = vmul.f32 %v14, %v32
  %v35 = vmul.f32 %v15, %v32
  %v36 = vmul.f32 %v16, %v32
  %v37 = vmul.f32 %v17, %v32
  %v38 = vmul.f32 %v18, %v32
  %v39 = vmul.f32 %v19, %v32
  %v40 = vmul.f32 %v20, %v32
  %v41 = vmul.f32 %v21, %v32
  %v42 = vmul.f32 %v22, %v32
  %v43 = vmul.f32 %v23, %v32
  %v44 = vmul.f32 %v24, %v32
  %v45 = vmul.f32 %v25, %v32
  %v46 = vmul.f32 %v26, %v32
  %v47 = vmul.f32 %v27, %v32
  %v48 = vmul.f32 %v28, %v32
  %v49 = vmul.f32 %v29, %v32
  %v50 = vld [vmem:[%s2] sm:$0x1]
  %v52 = vperm.slane %v50, 0
  %v54 = vadd.f32 %v34, %v52
  %v55 = vadd.f32 %v35, %v52
  %v56 = vadd.f32 %v36, %v52
  %v57 = vadd.f32 %v37, %v52
  %v58 = vadd.f32 %v38, %v52
  %v59 = vadd.f32 %v39, %v52
  %v60 = vadd.f32 %v40, %v52
  %v61 = vadd.f32 %v41, %v52
  %v62 = vadd.f32 %v42, %v52
  %v63 = vadd.f32 %v43, %v52
  %v64 = vadd.f32 %v44, %v52
  %v65 = vadd.f32 %v45, %v52
  %v66 = vadd.f32 %v46, %v52
  %v67 = vadd.f32 %v47, %v52
  %v68 = vadd.f32 %v48, %v52
  %v69 = vadd.f32 %v49, %v52
  %vm70 = vcmp.ge.f32.partialorder %v54, 0.0
  %vm71 = vcmp.ge.f32.partialorder %v55, 0.0
  %vm72 = vcmp.ge.f32.partialorder %v56, 0.0
  %vm73 = vcmp.ge.f32.partialorder %v57, 0.0
  %vm74 = vcmp.ge.f32.partialorder %v58, 0.0
  %vm75 = vcmp.ge.f32.partialorder %v59, 0.0
  %vm76 = vcmp.ge.f32.partialorder %v60, 0.0
  %vm77 = vcmp.ge.f32.partialorder %v61, 0.0
  %vm78 = vcmp.ge.f32.partialorder %v62, 0.0
  %vm79 = vcmp.ge.f32.partialorder %v63, 0.0
  %vm80 = vcmp.ge.f32.partialorder %v64, 0.0
  %vm81 = vcmp.ge.f32.partialorder %v65, 0.0
  %vm82 = vcmp.ge.f32.partialorder %v66, 0.0
  %vm83 = vcmp.ge.f32.partialorder %v67, 0.0
  %vm84 = vcmp.ge.f32.partialorder %v68, 0.0
  %vm85 = vcmp.ge.f32.partialorder %v69, 0.0
  %v86 = vmul.f32 %v54, 0.2
  %v87 = vmul.f32 %v55, 0.2
  %v88 = vmul.f32 %v56, 0.2
  %v89 = vmul.f32 %v57, 0.2
  %v90 = vmul.f32 %v58, 0.2
  %v91 = vmul.f32 %v59, 0.2
  %v92 = vmul.f32 %v60, 0.2
  %v93 = vmul.f32 %v61, 0.2
  %v94 = vmul.f32 %v62, 0.2
  %v95 = vmul.f32 %v63, 0.2
  %v96 = vmul.f32 %v64, 0.2
  %v97 = vmul.f32 %v65, 0.2
  %v98 = vmul.f32 %v66, 0.2
  %v99 = vmul.f32 %v67, 0.2
  %v100 = vmul.f32 %v68, 0.2
  %v101 = vmul.f32 %v69, 0.2
  %v102 = vsel %vm70, %v54, %v86
  %v103 = vsel %vm71, %v55, %v87
  %v104 = vsel %vm72, %v56, %v88
  %v105 = vsel %vm73, %v57, %v89
  %v106 = vsel %vm74, %v58, %v90
  %v107 = vsel %vm75, %v59, %v91
  %v108 = vsel %vm76, %v60, %v92
  %v109 = vsel %vm77, %v61, %v93
  %v110 = vsel %vm78, %v62, %v94
  %v111 = vsel %vm79, %v63, %v95
  %v112 = vsel %vm80, %v64, %v96
  %v113 = vsel %vm81, %v65, %v97
  %v114 = vsel %vm82, %v66, %v98
  %v115 = vsel %vm83, %v67, %v99
  %v116 = vsel %vm84, %v68, %v100
  %v117 = vsel %vm85, %v69, %v101
  %vm118 = vcmask 130048
  %119 = vst.msk [vmem:[%s3] sm:$0xff] %vm118, %v102
  %120 = vst.msk [vmem:[%s3 + $0x8] sm:$0xff] %vm118, %v103
  %121 = vst.msk [vmem:[%s3 + $0x10] sm:$0xff] %vm118, %v104
  %122 = vst.msk [vmem:[%s3 + $0x18] sm:$0xff] %vm118, %v105
  %123 = vst.msk [vmem:[%s3 + $0x20] sm:$0xff] %vm118, %v106
  %124 = vst.msk [vmem:[%s3 + $0x28] sm:$0xff] %vm118, %v107
  %125 = vst.msk [vmem:[%s3 + $0x30] sm:$0xff] %vm118, %v108
  %126 = vst.msk [vmem:[%s3 + $0x38] sm:$0xff] %vm118, %v109
  %127 = vst.msk [vmem:[%s3 + $0x40] sm:$0xff] %vm118, %v110
  %128 = vst.msk [vmem:[%s3 + $0x48] sm:$0xff] %vm118, %v111
  %129 = vst.msk [vmem:[%s3 + $0x50] sm:$0xff] %vm118, %v112
  %130 = vst.msk [vmem:[%s3 + $0x58] sm:$0xff] %vm118, %v113
  %131 = vst.msk [vmem:[%s3 + $0x60] sm:$0xff] %vm118, %v114
  %132 = vst.msk [vmem:[%s3 + $0x68] sm:$0xff] %vm118, %v115
  %133 = vst.msk [vmem:[%s3 + $0x70] sm:$0xff] %vm118, %v116
  %134 = vst.msk [vmem:[%s3 + $0x78] sm:$0xff] %vm118, %v117
  // Predicated region
  $region14: #{encoder_forward.9} parent=0 // pred_check
    _
  $region15: #{encoder_forward.9} parent=0 // pred_check_branch
    %136 = sbr.rel (0) target = $region17
  $region16: #{encoder_forward.9} parent=0 // pred_region
    _
  $region17: #{encoder_forward.9} parent=0 // pred_fallthru
    _
  // Predicated region
  $region18: #{encoder_forward.9} parent=0 // pred_check
    _
  $region19: #{encoder_forward.9} parent=0 // pred_check_branch
    %138 = sbr.rel (0) target = $region21
  $region20: #{encoder_forward.9} parent=0 // pred_region
    _
  $region21: #{encoder_forward.9} parent=0 // pred_fallthru
    _

// kernel: encoder_forward.10
$region0: #{encoder_forward.10}
  #allocation0 [shape = 'u32[]', space=smem, size = 0x4, offset = 0x4, fixed_abs, tag = 'smem constant byte address 0x4 - core index']
  #allocation1 [shape = 'u32[72,128]{1,0:T(1,128)}', space=vmem, size = 0x9000, scoped, tag = 'internal scratch']
  #allocation2 [shape = 'f32[32,32]{1,0:T(8,128)}', space=vmem, size = 0x4000, scoped, tag = 'scratch operand']
  %s0 = inlined_call_operand.vmem [shape: f32[32,256], index: 0, kind: input, shape index: {}]
  %s1 = inlined_call_operand.vmem [shape: f32[256,32], index: 1, kind: input, shape index: {}]
  %s2 = inlined_call_operand.vmem [shape: f32[32,32], index: 2, kind: output, shape index: {0}]
  %s3 = inlined_call_operand.vmem [shape: f32[1,1,32], index: 3, kind: output, shape index: {1}]
  %s4 = inlined_call_operand.vmem [shape: f32[1,1,32], index: 4, kind: output, shape index: {2}]
  %5 = xla_tuple %s2, %s3, %s4
  %s6 = sld [smem:[#allocation0]]
  $region42: #{encoder_forward.10} parent=0
    _
  %s8 = ssub.s32 1, %s6
  %s9 = scalar_select 0, %s8, %s6
  // Predicated region
  $region2: #{encoder_forward.10} parent=0 // pred_check
    _
  $region3: #{encoder_forward.10} parent=0 // pred_check_branch
    %11 = sbr.rel (0) target = $region5
  $region4: #{encoder_forward.10} parent=0 // pred_region
    _
  $region5: #{encoder_forward.10} parent=0 // pred_fallthru
    _
  // Predicated region
  $region6: #{encoder_forward.10} parent=0 // pred_check
    _
  $region7: #{encoder_forward.10} parent=0 // pred_check_branch
    %13 = sbr.rel (0) target = $region9
  $region8: #{encoder_forward.10} parent=0 // pred_region
    _
  $region9: #{encoder_forward.10} parent=0 // pred_fallthru
    _
  %p14 = scmp.eq.s32.totalorder 0, 0
  // Predicated region
  $region10: #{encoder_forward.10} parent=0 // pred_check
    %p15 = pneg %p14
  $region11: #{encoder_forward.10} parent=0 // pred_check_branch
    %17 = sbr.rel (%p15) target = $region13
  $region12: #{encoder_forward.10} parent=0 // pred_region
    %vm18 = vcmask 261120
    %19 = vst.msk [vmem:[#allocation2] sm:$0xff] %vm18, 0.0
    %20 = vst.msk [vmem:[#allocation2 + $0x8] sm:$0xff] %vm18, 0.0
    %21 = vst.msk [vmem:[#allocation2 + $0x10] sm:$0xff] %vm18, 0.0
    %22 = vst.msk [vmem:[#allocation2 + $0x18] sm:$0xff] %vm18, 0.0
  $region13: #{encoder_forward.10} parent=0 // pred_fallthru
    _
  %v23 = vld [vmem:[#allocation2] sm:$0xff]
  %v24 = vld [vmem:[#allocation2 + $0x8] sm:$0xff]
  %v25 = vld [vmem:[#allocation2 + $0x10] sm:$0xff]
  %v26 = vld [vmem:[#allocation2 + $0x18] sm:$0xff]
  %v27 = vld [vmem:[%s0] sm:$0xff]
  %v28 = vld [vmem:[%s0 + $0x8] sm:$0xff]
  %v29 = vld [vmem:[%s0 + $0x10] sm:$0xff]
  %v30 = vld [vmem:[%s0 + $0x18] sm:$0xff]
  %v31 = vld [vmem:[%s0 + $0x20] sm:$0xff]
  %v32 = vld [vmem:[%s0 + $0x28] sm:$0xff]
  %v33 = vld [vmem:[%s0 + $0x30] sm:$0xff]
  %v34 = vld [vmem:[%s0 + $0x38] sm:$0xff]
  %v35 = vld [vmem:[%s1] sm:$0xff]
  %v36 = vld [vmem:[%s1 + $0x8] sm:$0xff]
  %v37 = vld [vmem:[%s1 + $0x10] sm:$0xff]
  %v38 = vld [vmem:[%s1 + $0x18] sm:$0xff]
  %v39 = vld [vmem:[%s1 + $0x20] sm:$0xff]
  %v40 = vld [vmem:[%s1 + $0x28] sm:$0xff]
  %v41 = vld [vmem:[%s1 + $0x30] sm:$0xff]
  %v42 = vld [vmem:[%s1 + $0x38] sm:$0xff]
  %v43 = vld [vmem:[%s1 + $0x40] sm:$0xff]
  %v44 = vld [vmem:[%s1 + $0x48] sm:$0xff]
  %v45 = vld [vmem:[%s1 + $0x50] sm:$0xff]
  %v46 = vld [vmem:[%s1 + $0x58] sm:$0xff]
  %v47 = vld [vmem:[%s1 + $0x60] sm:$0xff]
  %v48 = vld [vmem:[%s1 + $0x68] sm:$0xff]
  %v49 = vld [vmem:[%s1 + $0x70] sm:$0xff]
  %v50 = vld [vmem:[%s1 + $0x78] sm:$0xff]
  %v51 = vld [vmem:[%s1 + $0x80] sm:$0xff]
  %v52 = vld [vmem:[%s1 + $0x88] sm:$0xff]
  %v53 = vld [vmem:[%s1 + $0x90] sm:$0xff]
  %v54 = vld [vmem:[%s1 + $0x98] sm:$0xff]
  %v55 = vld [vmem:[%s1 + $0xa0] sm:$0xff]
  %v56 = vld [vmem:[%s1 + $0xa8] sm:$0xff]
  %v57 = vld [vmem:[%s1 + $0xb0] sm:$0xff]
  %v58 = vld [vmem:[%s1 + $0xb8] sm:$0xff]
  %v59 = vld [vmem:[%s1 + $0xc0] sm:$0xff]
  %v60 = vld [vmem:[%s1 + $0xc8] sm:$0xff]
  %v61 = vld [vmem:[%s1 + $0xd0] sm:$0xff]
  %v62 = vld [vmem:[%s1 + $0xd8] sm:$0xff]
  %v63 = vld [vmem:[%s1 + $0xe0] sm:$0xff]
  %v64 = vld [vmem:[%s1 + $0xe8] sm:$0xff]
  %v65 = vld [vmem:[%s1 + $0xf0] sm:$0xff]
  %v66 = vld [vmem:[%s1 + $0xf8] sm:$0xff]
  %67 = vmatpush.msra.mxu0 %v50
  %68 = vmatpush.msra.mxu0 %v49
  %69 = vmatpush.msra.mxu0 %v48
  %70 = vmatpush.msra.mxu0 %v47
  %71 = vmatpush.msra.mxu0 %v46
  %72 = vmatpush.msra.mxu0 %v45
  %73 = vmatpush.msra.mxu0 %v44
  %74 = vmatpush.msra.mxu0 %v43
  %75 = vmatpush.msra.mxu0 %v42
  %76 = vmatpush.msra.mxu0 %v41
  %77 = vmatpush.msra.mxu0 %v40
  %78 = vmatpush.msra.mxu0 %v39
  %79 = vmatpush.msra.mxu0 %v38
  %80 = vmatpush.msra.mxu0 %v37
  %81 = vmatpush.msra.mxu0 %v36
  %82 = vmatpush.msra.mxu0 %v35
  %83 = vmatmul.f32.gmra.mxu0 %v27
  %v84 = vpop.f32.mrf.mxu0
  %v85 = vadd.f32 0.0, %v84
  %86 = vmatmul.f32.gmra.mxu0 %v29
  %v87 = vpop.f32.mrf.mxu0
  %v88 = vadd.f32 0.0, %v87
  %89 = vmatmul.f32.gmra.mxu0 %v31
  %v90 = vpop.f32.mrf.mxu0
  %v91 = vadd.f32 0.0, %v90
  %92 = vmatmul.f32.gmra.mxu0 %v33
  %v93 = vpop.f32.mrf.mxu0
  %v94 = vadd.f32 0.0, %v93
  %95 = vdwg.mxu0
  %96 = vmatpush.msra.mxu0 %v66
  %97 = vmatpush.msra.mxu0 %v65
  %98 = vmatpush.msra.mxu0 %v64
  %99 = vmatpush.msra.mxu0 %v63
  %100 = vmatpush.msra.mxu0 %v62
  %101 = vmatpush.msra.mxu0 %v61
  %102 = vmatpush.msra.mxu0 %v60
  %103 = vmatpush.msra.mxu0 %v59
  %104 = vmatpush.msra.mxu0 %v58
  %105 = vmatpush.msra.mxu0 %v57
  %106 = vmatpush.msra.mxu0 %v56
  %107 = vmatpush.msra.mxu0 %v55
  %108 = vmatpush.msra.mxu0 %v54
  %109 = vmatpush.msra.mxu0 %v53
  %110 = vmatpush.msra.mxu0 %v52
  %111 = vmatpush.msra.mxu0 %v51
  %112 = vmatmul.f32.gmra.mxu0 %v28
  %v113 = vpop.f32.mrf.mxu0
  %v114 = vadd.f32 %v85, %v113
  %115 = vmatmul.f32.gmra.mxu0 %v30
  %v116 = vpop.f32.mrf.mxu0
  %v117 = vadd.f32 %v88, %v116
  %118 = vmatmul.f32.gmra.mxu0 %v32
  %v119 = vpop.f32.mrf.mxu0
  %v120 = vadd.f32 %v91, %v119
  %121 = vmatmul.f32.gmra.mxu0 %v34
  %v122 = vpop.f32.mrf.mxu0
  %v123 = vadd.f32 %v94, %v122
  %124 = vdwg.mxu0
  %v125 = vadd.f32 %v23, %v114
  %v126 = vadd.f32 %v24, %v117
  %v127 = vadd.f32 %v25, %v120
  %v128 = vadd.f32 %v26, %v123
  %vm129 = vcmask 261120
  %130 = vst.msk [vmem:[#allocation2] sm:$0xff] %vm129, %v125
  %131 = vst.msk [vmem:[#allocation2 + $0x8] sm:$0xff] %vm129, %v126
  %132 = vst.msk [vmem:[#allocation2 + $0x10] sm:$0xff] %vm129, %v127
  %133 = vst.msk [vmem:[#allocation2 + $0x18] sm:$0xff] %vm129, %v128
  // Predicated region
  $region14: #{encoder_forward.10} parent=0 // pred_check
    %p134 = pneg %p14
  $region15: #{encoder_forward.10} parent=0 // pred_check_branch
    %136 = sbr.rel (%p134) target = $region17
  $region16: #{encoder_forward.10} parent=0 // pred_region
    %v137 = vld [vmem:[#allocation2] sm:$0xff]
    %v138 = vld [vmem:[#allocation2 + $0x8] sm:$0xff]
    %v139 = vld [vmem:[#allocation2 + $0x10] sm:$0xff]
    %v140 = vld [vmem:[#allocation2 + $0x18] sm:$0xff]
    %141 = vst.msk [vmem:[%s2] sm:$0xff] %vm129, %v137
    %142 = vst.msk [vmem:[%s2 + $0x8] sm:$0xff] %vm129, %v138
    %143 = vst.msk [vmem:[%s2 + $0x10] sm:$0xff] %vm129, %v139
    %144 = vst.msk [vmem:[%s2 + $0x18] sm:$0xff] %vm129, %v140
    %v145 = vsel %vm129, %v137, 0.0
    %v146 = vsel %vm129, %v138, 0.0
    %v147 = vadd.f32 %v145, %v146
    %v148 = vsel %vm129, %v139, 0.0
    %v149 = vadd.f32 %v147, %v148
    %v150 = vsel %vm129, %v140, 0.0
    %v151 = vadd.f32 %v149, %v150
    %v152 = vrot.slane %v151, 4
    %v153 = vadd.f32 %v151, %v152
    %v154 = vrot.slane %v153, 2
    %v155 = vadd.f32 %v153, %v154
    %v156 = vrot.slane %v155, 1
    %v157 = vadd.f32 %v155, %v156
    %vm158 = vcmask 253952
    %159 = vst.msk [vmem:[%s3] sm:$0x1] %vm158, %v157
    %v160 = vmul.f32 %v137, %v137
    %v161 = vmul.f32 %v138, %v138
    %v162 = vmul.f32 %v139, %v139
    %v163 = vmul.f32 %v140, %v140
    %v164 = vsel %vm129, %v160, 0.0
    %v165 = vsel %vm129, %v161, 0.0
    %v166 = vadd.f32 %v164, %v165
    %v167 = vsel %vm129, %v162, 0.0
    %v168 = vadd.f32 %v166, %v167
    %v169 = vsel %vm129, %v163, 0.0
    %v170 = vadd.f32 %v168, %v169
    %v171 = vrot.slane %v170, 4
    %v172 = vadd.f32 %v170, %v171
    %v173 = vrot.slane %v172, 2
    %v174 = vadd.f32 %v172, %v173
    %v175 = vrot.slane %v174, 1
    %v176 = vadd.f32 %v174, %v175
    %177 = vst.msk [vmem:[%s4] sm:$0x1] %vm158, %v176
  $region17: #{encoder_forward.10} parent=0 // pred_fallthru
    _
  // Predicated region
  $region18: #{encoder_forward.10} parent=0 // pred_check
    _
  $region19: #{encoder_forward.10} parent=0 // pred_check_branch
    %179 = sbr.rel (0) target = $region21
  $region20: #{encoder_forward.10} parent=0 // pred_region
    _
  $region21: #{encoder_forward.10} parent=0 // pred_fallthru
    _
  // Predicated region
  $region22: #{encoder_forward.10} parent=0 // pred_check
    _
  $region23: #{encoder_forward.10} parent=0 // pred_check_branch
    %181 = sbr.rel (0) target = $region25
  $region24: #{encoder_forward.10} parent=0 // pred_region
    _
  $region25: #{encoder_forward.10} parent=0 // pred_fallthru
    _
  // Predicated region
  $region26: #{encoder_forward.10} parent=0 // pred_check
    _
  $region27: #{encoder_forward.10} parent=0 // pred_check_branch
    %183 = sbr.rel (0) target = $region29
  $region28: #{encoder_forward.10} parent=0 // pred_region
    _
  $region29: #{encoder_forward.10} parent=0 // pred_fallthru
    _
  // Predicated region
  $region30: #{encoder_forward.10} parent=0 // pred_check
    _
  $region31: #{encoder_forward.10} parent=0 // pred_check_branch
    %185 = sbr.rel (0) target = $region33
  $region32: #{encoder_forward.10} parent=0 // pred_region
    _
  $region33: #{encoder_forward.10} parent=0 // pred_fallthru
    _
  // Predicated region
  $region34: #{encoder_forward.10} parent=0 // pred_check
    _
  $region35: #{encoder_forward.10} parent=0 // pred_check_branch
    %187 = sbr.rel (0) target = $region37
  $region36: #{encoder_forward.10} parent=0 // pred_region
    _
  $region37: #{encoder_forward.10} parent=0 // pred_fallthru
    _
  // Predicated region
  $region38: #{encoder_forward.10} parent=0 // pred_check
    _
  $region39: #{encoder_forward.10} parent=0 // pred_check_branch
    %189 = sbr.rel (0) target = $region41
  $region40: #{encoder_forward.10} parent=0 // pred_region
    _
  $region41: #{encoder_forward.10} parent=0 // pred_fallthru
    _

// kernel: encoder_forward.11
$region0: #{encoder_forward.11}
  #allocation0 [shape = 'u32[]', space=smem, size = 0x4, offset = 0x4, fixed_abs, tag = 'smem constant byte address 0x4 - core index']
  #allocation1 [shape = 'u32[72,128]{1,0:T(1,128)}', space=vmem, size = 0x9000, scoped, tag = 'internal scratch']
  %s0 = inlined_call_operand.vmem [shape: f32[32,32], index: 0, kind: input, shape index: {}]
  %s1 = inlined_call_operand.vmem [shape: f32[1,32], index: 1, kind: input, shape index: {}]
  %s2 = inlined_call_operand.vmem [shape: f32[1,32], index: 2, kind: input, shape index: {}]
  %s3 = inlined_call_operand.vmem [shape: f32[32,32], index: 3, kind: output, shape index: {}]
  %s4 = sld [smem:[#allocation0]]
  $region22: #{encoder_forward.11} parent=0
    _
  %s6 = ssub.s32 1, %s4
  %s7 = scalar_select 0, %s6, %s4
  // Predicated region
  $region2: #{encoder_forward.11} parent=0 // pred_check
    _
  $region3: #{encoder_forward.11} parent=0 // pred_check_branch
    %9 = sbr.rel (0) target = $region5
  $region4: #{encoder_forward.11} parent=0 // pred_region
    _
  $region5: #{encoder_forward.11} parent=0 // pred_fallthru
    _
  // Predicated region
  $region6: #{encoder_forward.11} parent=0 // pred_check
    _
  $region7: #{encoder_forward.11} parent=0 // pred_check_branch
    %11 = sbr.rel (0) target = $region9
  $region8: #{encoder_forward.11} parent=0 // pred_region
    _
  $region9: #{encoder_forward.11} parent=0 // pred_fallthru
    _
  // Predicated region
  $region10: #{encoder_forward.11} parent=0 // pred_check
    _
  $region11: #{encoder_forward.11} parent=0 // pred_check_branch
    %13 = sbr.rel (0) target = $region13
  $region12: #{encoder_forward.11} parent=0 // pred_region
    _
  $region13: #{encoder_forward.11} parent=0 // pred_fallthru
    _
  %v14 = vld [vmem:[%s0] sm:$0xff]
  %v15 = vld [vmem:[%s0 + $0x8] sm:$0xff]
  %v16 = vld [vmem:[%s0 + $0x10] sm:$0xff]
  %v17 = vld [vmem:[%s0 + $0x18] sm:$0xff]
  %v18 = vld [vmem:[%s1] sm:$0x1]
  %v20 = vperm.slane %v18, 0
  %v22 = vmul.f32 %v14, %v20
  %v23 = vmul.f32 %v15, %v20
  %v24 = vmul.f32 %v16, %v20
  %v25 = vmul.f32 %v17, %v20
  %v26 = vld [vmem:[%s2] sm:$0x1]
  %v28 = vperm.slane %v26, 0
  %v30 = vadd.f32 %v22, %v28
  %v31 = vadd.f32 %v23, %v28
  %v32 = vadd.f32 %v24, %v28
  %v33 = vadd.f32 %v25, %v28
  %vm34 = vcmp.ge.f32.partialorder %v30, 0.0
  %vm35 = vcmp.ge.f32.partialorder %v31, 0.0
  %vm36 = vcmp.ge.f32.partialorder %v32, 0.0
  %vm37 = vcmp.ge.f32.partialorder %v33, 0.0
  %v38 = vmul.f32 %v30, 0.2
  %v39 = vmul.f32 %v31, 0.2
  %v40 = vmul.f32 %v32, 0.2
  %v41 = vmul.f32 %v33, 0.2
  %v42 = vsel %vm34, %v30, %v38
  %v43 = vsel %vm35, %v31, %v39
  %v44 = vsel %vm36, %v32, %v40
  %v45 = vsel %vm37, %v33, %v41
  %vm46 = vcmask 261120
  %47 = vst.msk [vmem:[%s3] sm:$0xff] %vm46, %v42
  %48 = vst.msk [vmem:[%s3 + $0x8] sm:$0xff] %vm46, %v43
  %49 = vst.msk [vmem:[%s3 + $0x10] sm:$0xff] %vm46, %v44
  %50 = vst.msk [vmem:[%s3 + $0x18] sm:$0xff] %vm46, %v45
  // Predicated region
  $region14: #{encoder_forward.11} parent=0 // pred_check
    _
  $region15: #{encoder_forward.11} parent=0 // pred_check_branch
    %52 = sbr.rel (0) target = $region17
  $region16: #{encoder_forward.11} parent=0 // pred_region
    _
  $region17: #{encoder_forward.11} parent=0 // pred_fallthru
    _
  // Predicated region
  $region18: #{encoder_forward.11} parent=0 // pred_check
    _
  $region19: #{encoder_forward.11} parent=0 // pred_check_branch
    %54 = sbr.rel (0) target = $region21
  $region20: #{encoder_forward.11} parent=0 // pred_region
    _
  $region21: #{encoder_forward.11} parent=0 // pred_fallthru
    _

// kernel: encoder_forward.12
$region0: #{encoder_forward.12}
  #allocation0 [shape = 'u32[]', space=smem, size = 0x4, offset = 0x4, fixed_abs, tag = 'smem constant byte address 0x4 - core index']
  #allocation1 [shape = 'u32[72,128]{1,0:T(1,128)}', space=vmem, size = 0x9000, scoped, tag = 'internal scratch']
  #allocation2 [shape = 'f32[8,64]{1,0:T(8,128)}', space=vmem, size = 0x1000, scoped, tag = 'scratch operand']
  %s0 = inlined_call_operand.vmem [shape: f32[8,512], index: 0, kind: input, shape index: {}]
  %s1 = inlined_call_operand.vmem [shape: f32[512,64], index: 1, kind: input, shape index: {}]
  %s2 = inlined_call_operand.vmem [shape: f32[8,64], index: 2, kind: output, shape index: {0}]
  %s3 = inlined_call_operand.vmem [shape: f32[1,1,64], index: 3, kind: output, shape index: {1}]
  %s4 = inlined_call_operand.vmem [shape: f32[1,1,64], index: 4, kind: output, shape index: {2}]
  %5 = xla_tuple %s2, %s3, %s4
  %s6 = sld [smem:[#allocation0]]
  $region42: #{encoder_forward.12} parent=0
    _
  %s8 = ssub.s32 1, %s6
  %s9 = scalar_select 0, %s8, %s6
  // Predicated region
  $region2: #{encoder_forward.12} parent=0 // pred_check
    _
  $region3: #{encoder_forward.12} parent=0 // pred_check_branch
    %11 = sbr.rel (0) target = $region5
  $region4: #{encoder_forward.12} parent=0 // pred_region
    _
  $region5: #{encoder_forward.12} parent=0 // pred_fallthru
    _
  // Predicated region
  $region6: #{encoder_forward.12} parent=0 // pred_check
    _
  $region7: #{encoder_forward.12} parent=0 // pred_check_branch
    %13 = sbr.rel (0) target = $region9
  $region8: #{encoder_forward.12} parent=0 // pred_region
    _
  $region9: #{encoder_forward.12} parent=0 // pred_fallthru
    _
  %p14 = scmp.eq.s32.totalorder 0, 0
  // Predicated region
  $region10: #{encoder_forward.12} parent=0 // pred_check
    %p15 = pneg %p14
  $region11: #{encoder_forward.12} parent=0 // pred_check_branch
    %17 = sbr.rel (%p15) target = $region13
  $region12: #{encoder_forward.12} parent=0 // pred_region
    %vm18 = vcmask 523264
    %19 = vst.msk [vmem:[#allocation2] sm:$0xff] %vm18, 0.0
  $region13: #{encoder_forward.12} parent=0 // pred_fallthru
    _
  %v20 = vld [vmem:[#allocation2] sm:$0xff]
  %v21 = vld [vmem:[%s0] sm:$0xff]
  %v22 = vld [vmem:[%s0 + $0x8] sm:$0xff]
  %v23 = vld [vmem:[%s0 + $0x10] sm:$0xff]
  %v24 = vld [vmem:[%s0 + $0x18] sm:$0xff]
  %v25 = vld [vmem:[%s1] sm:$0xff]
  %v26 = vld [vmem:[%s1 + $0x8] sm:$0xff]
  %v27 = vld [vmem:[%s1 + $0x10] sm:$0xff]
  %v28 = vld [vmem:[%s1 + $0x18] sm:$0xff]
  %v29 = vld [vmem:[%s1 + $0x20] sm:$0xff]
  %v30 = vld [vmem:[%s1 + $0x28] sm:$0xff]
  %v31 = vld [vmem:[%s1 + $0x30] sm:$0xff]
  %v32 = vld [vmem:[%s1 + $0x38] sm:$0xff]
  %v33 = vld [vmem:[%s1 + $0x40] sm:$0xff]
  %v34 = vld [vmem:[%s1 + $0x48] sm:$0xff]
  %v35 = vld [vmem:[%s1 + $0x50] sm:$0xff]
  %v36 = vld [vmem:[%s1 + $0x58] sm:$0xff]
  %v37 = vld [vmem:[%s1 + $0x60] sm:$0xff]
  %v38 = vld [vmem:[%s1 + $0x68] sm:$0xff]
  %v39 = vld [vmem:[%s1 + $0x70] sm:$0xff]
  %v40 = vld [vmem:[%s1 + $0x78] sm:$0xff]
  %v41 = vld [vmem:[%s1 + $0x80] sm:$0xff]
  %v42 = vld [vmem:[%s1 + $0x88] sm:$0xff]
  %v43 = vld [vmem:[%s1 + $0x90] sm:$0xff]
  %v44 = vld [vmem:[%s1 + $0x98] sm:$0xff]
  %v45 = vld [vmem:[%s1 + $0xa0] sm:$0xff]
  %v46 = vld [vmem:[%s1 + $0xa8] sm:$0xff]
  %v47 = vld [vmem:[%s1 + $0xb0] sm:$0xff]
  %v48 = vld [vmem:[%s1 + $0xb8] sm:$0xff]
  %v49 = vld [vmem:[%s1 + $0xc0] sm:$0xff]
  %v50 = vld [vmem:[%s1 + $0xc8] sm:$0xff]
  %v51 = vld [vmem:[%s1 + $0xd0] sm:$0xff]
  %v52 = vld [vmem:[%s1 + $0xd8] sm:$0xff]
  %v53 = vld [vmem:[%s1 + $0xe0] sm:$0xff]
  %v54 = vld [vmem:[%s1 + $0xe8] sm:$0xff]
  %v55 = vld [vmem:[%s1 + $0xf0] sm:$0xff]
  %v56 = vld [vmem:[%s1 + $0xf8] sm:$0xff]
  %v57 = vld [vmem:[%s1 + $0x100] sm:$0xff]
  %v58 = vld [vmem:[%s1 + $0x108] sm:$0xff]
  %v59 = vld [vmem:[%s1 + $0x110] sm:$0xff]
  %v60 = vld [vmem:[%s1 + $0x118] sm:$0xff]
  %v61 = vld [vmem:[%s1 + $0x120] sm:$0xff]
  %v62 = vld [vmem:[%s1 + $0x128] sm:$0xff]
  %v63 = vld [vmem:[%s1 + $0x130] sm:$0xff]
  %v64 = vld [vmem:[%s1 + $0x138] sm:$0xff]
  %v65 = vld [vmem:[%s1 + $0x140] sm:$0xff]
  %v66 = vld [vmem:[%s1 + $0x148] sm:$0xff]
  %v67 = vld [vmem:[%s1 + $0x150] sm:$0xff]
  %v68 = vld [vmem:[%s1 + $0x158] sm:$0xff]
  %v69 = vld [vmem:[%s1 + $0x160] sm:$0xff]
  %v70 = vld [vmem:[%s1 + $0x168] sm:$0xff]
  %v71 = vld [vmem:[%s1 + $0x170] sm:$0xff]
  %v72 = vld [vmem:[%s1 + $0x178] sm:$0xff]
  %v73 = vld [vmem:[%s1 + $0x180] sm:$0xff]
  %v74 = vld [vmem:[%s1 + $0x188] sm:$0xff]
  %v75 = vld [vmem:[%s1 + $0x190] sm:$0xff]
  %v76 = vld [vmem:[%s1 + $0x198] sm:$0xff]
  %v77 = vld [vmem:[%s1 + $0x1a0] sm:$0xff]
  %v78 = vld [vmem:[%s1 + $0x1a8] sm:$0xff]
  %v79 = vld [vmem:[%s1 + $0x1b0] sm:$0xff]
  %v80 = vld [vmem:[%s1 + $0x1b8] sm:$0xff]
  %v81 = vld [vmem:[%s1 + $0x1c0] sm:$0xff]
  %v82 = vld [vmem:[%s1 + $0x1c8] sm:$0xff]
  %v83 = vld [vmem:[%s1 + $0x1d0] sm:$0xff]
  %v84 = vld [vmem:[%s1 + $0x1d8] sm:$0xff]
  %v85 = vld [vmem:[%s1 + $0x1e0] sm:$0xff]
  %v86 = vld [vmem:[%s1 + $0x1e8] sm:$0xff]
  %v87 = vld [vmem:[%s1 + $0x1f0] sm:$0xff]
  %v88 = vld [vmem:[%s1 + $0x1f8] sm:$0xff]
  %89 = vmatpush.msra.mxu0 %v40
  %90 = vmatpush.msra.mxu0 %v39
  %91 = vmatpush.msra.mxu0 %v38
  %92 = vmatpush.msra.mxu0 %v37
  %93 = vmatpush.msra.mxu0 %v36
  %94 = vmatpush.msra.mxu0 %v35
  %95 = vmatpush.msra.mxu0 %v34
  %96 = vmatpush.msra.mxu0 %v33
  %97 = vmatpush.msra.mxu0 %v32
  %98 = vmatpush.msra.mxu0 %v31
  %99 = vmatpush.msra.mxu0 %v30
  %100 = vmatpush.msra.mxu0 %v29
  %101 = vmatpush.msra.mxu0 %v28
  %102 = vmatpush.msra.mxu0 %v27
  %103 = vmatpush.msra.mxu0 %v26
  %104 = vmatpush.msra.mxu0 %v25
  %105 = vmatmul.f32.gmra.mxu0 %v21
  %v106 = vpop.f32.mrf.mxu0
  %v107 = vadd.f32 0.0, %v106
  %108 = vdwg.mxu0
  %109 = vmatpush.msra.mxu0 %v56
  %110 = vmatpush.msra.mxu0 %v55
  %111 = vmatpush.msra.mxu0 %v54
  %112 = vmatpush.msra.mxu0 %v53
  %113 = vmatpush.msra.mxu0 %v52
  %114 = vmatpush.msra.mxu0 %v51
  %115 = vmatpush.msra.mxu0 %v50
  %116 = vmatpush.msra.mxu0 %v49
  %117 = vmatpush.msra.mxu0 %v48
  %118 = vmatpush.msra.mxu0 %v47
  %119 = vmatpush.msra.mxu0 %v46
  %120 = vmatpush.msra.mxu0 %v45
  %121 = vmatpush.msra.mxu0 %v44
  %122 = vmatpush.msra.mxu0 %v43
  %123 = vmatpush.msra.mxu0 %v42
  %124 = vmatpush.msra.mxu0 %v41
  %125 = vmatmul.f32.gmra.mxu0 %v22
  %v126 = vpop.f32.mrf.mxu0
  %v127 = vadd.f32 %v107, %v126
  %128 = vdwg.mxu0
  %129 = vmatpush.msra.mxu0 %v72
  %130 = vmatpush.msra.mxu0 %v71
  %131 = vmatpush.msra.mxu0 %v70
  %132 = vmatpush.msra.mxu0 %v69
  %133 = vmatpush.msra.mxu0 %v68
  %134 = vmatpush.msra.mxu0 %v67
  %135 = vmatpush.msra.mxu0 %v66
  %136 = vmatpush.msra.mxu0 %v65
  %137 = vmatpush.msra.mxu0 %v64
  %138 = vmatpush.msra.mxu0 %v63
  %139 = vmatpush.msra.mxu0 %v62
  %140 = vmatpush.msra.mxu0 %v61
  %141 = vmatpush.msra.mxu0 %v60
  %142 = vmatpush.msra.mxu0 %v59
  %143 = vmatpush.msra.mxu0 %v58
  %144 = vmatpush.msra.mxu0 %v57
  %145 = vmatmul.f32.gmra.mxu0 %v23
  %v146 = vpop.f32.mrf.mxu0
  %v147 = vadd.f32 %v127, %v146
  %148 = vdwg.mxu0
  %149 = vmatpush.msra.mxu0 %v88
  %150 = vmatpush.msra.mxu0 %v87
  %151 = vmatpush.msra.mxu0 %v86
  %152 = vmatpush.msra.mxu0 %v85
  %153 = vmatpush.msra.mxu0 %v84
  %154 = vmatpush.msra.mxu0 %v83
  %155 = vmatpush.msra.mxu0 %v82
  %156 = vmatpush.msra.mxu0 %v81
  %157 = vmatpush.msra.mxu0 %v80
  %158 = vmatpush.msra.mxu0 %v79
  %159 = vmatpush.msra.mxu0 %v78
  %160 = vmatpush.msra.mxu0 %v77
  %161 = vmatpush.msra.mxu0 %v76
  %162 = vmatpush.msra.mxu0 %v75
  %163 = vmatpush.msra.mxu0 %v74
  %164 = vmatpush.msra.mxu0 %v73
  %165 = vmatmul.f32.gmra.mxu0 %v24
  %v166 = vpop.f32.mrf.mxu0
  %v167 = vadd.f32 %v147, %v166
  %168 = vdwg.mxu0
  %v169 = vadd.f32 %v20, %v167
  %vm170 = vcmask 523264
  %171 = vst.msk [vmem:[#allocation2] sm:$0xff] %vm170, %v169
  // Predicated region
  $region14: #{encoder_forward.12} parent=0 // pred_check
    %p172 = pneg %p14
  $region15: #{encoder_forward.12} parent=0 // pred_check_branch
    %174 = sbr.rel (%p172) target = $region17
  $region16: #{encoder_forward.12} parent=0 // pred_region
    %v175 = vld [vmem:[#allocation2] sm:$0xff]
    %176 = vst.msk [vmem:[%s2] sm:$0xff] %vm170, %v175
    %v177 = vsel %vm170, %v175, 0.0
    %v178 = vrot.slane %v177, 4
    %v179 = vadd.f32 %v177, %v178
    %v180 = vrot.slane %v179, 2
    %v181 = vadd.f32 %v179, %v180
    %v182 = vrot.slane %v181, 1
    %v183 = vadd.f32 %v181, %v182
    %vm184 = vcmask 516096
    %185 = vst.msk [vmem:[%s3] sm:$0x1] %vm184, %v183
    %v186 = vmul.f32 %v175, %v175
    %v187 = vsel %vm170, %v186, 0.0
    %v188 = vrot.slane %v187, 4
    %v189 = vadd.f32 %v187, %v188
    %v190 = vrot.slane %v189, 2
    %v191 = vadd.f32 %v189, %v190
    %v192 = vrot.slane %v191, 1
    %v193 = vadd.f32 %v191, %v192
    %194 = vst.msk [vmem:[%s4] sm:$0x1] %vm184, %v193
  $region17: #{encoder_forward.12} parent=0 // pred_fallthru
    _
  // Predicated region
  $region18: #{encoder_forward.12} parent=0 // pred_check
    _
  $region19: #{encoder_forward.12} parent=0 // pred_check_branch
    %196 = sbr.rel (0) target = $region21
  $region20: #{encoder_forward.12} parent=0 // pred_region
    _
  $region21: #{encoder_forward.12} parent=0 // pred_fallthru
    _
  // Predicated region
  $region22: #{encoder_forward.12} parent=0 // pred_check
    _
  $region23: #{encoder_forward.12} parent=0 // pred_check_branch
    %198 = sbr.rel (0) target = $region25
  $region24: #{encoder_forward.12} parent=0 // pred_region
    _
  $region25: #{encoder_forward.12} parent=0 // pred_fallthru
    _
  // Predicated region
  $region26: #{encoder_forward.12} parent=0 // pred_check
    _
  $region27: #{encoder_forward.12} parent=0 // pred_check_branch
    %200 = sbr.rel (0) target = $region29
  $region28: #{encoder_forward.12} parent=0 // pred_region
    _
  $region29: #{encoder_forward.12} parent=0 // pred_fallthru
    _
  // Predicated region
  $region30: #{encoder_forward.12} parent=0 // pred_check
    _
  $region31: #{encoder_forward.12} parent=0 // pred_check_branch
    %202 = sbr.rel (0) target = $region33
  $region32: #{encoder_forward.12} parent=0 // pred_region
    _
  $region33: #{encoder_forward.12} parent=0 // pred_fallthru
    _
  // Predicated region
  $region34: #{encoder_forward.12} parent=0 // pred_check
    _
  $region35: #{encoder_forward.12} parent=0 // pred_check_branch
    %204 = sbr.rel (0) target = $region37
  $region36: #{encoder_forward.12} parent=0 // pred_region
    _
  $region37: #{encoder_forward.12} parent=0 // pred_fallthru
    _
  // Predicated region
  $region38: #{encoder_forward.12} parent=0 // pred_check
    _
  $region39: #{encoder_forward.12} parent=0 // pred_check_branch
    %206 = sbr.rel (0) target = $region41
  $region40: #{encoder_forward.12} parent=0 // pred_region
    _
  $region41: #{encoder_forward.12} parent=0 // pred_fallthru
    _

// kernel: encoder_forward.13
$region0: #{encoder_forward.13}
  #allocation0 [shape = 'u32[]', space=smem, size = 0x4, offset = 0x4, fixed_abs, tag = 'smem constant byte address 0x4 - core index']
  #allocation1 [shape = 'u32[72,128]{1,0:T(1,128)}', space=vmem, size = 0x9000, scoped, tag = 'internal scratch']
  %s0 = inlined_call_operand.vmem [shape: f32[8,64], index: 0, kind: input, shape index: {}]
  %s1 = inlined_call_operand.vmem [shape: f32[1,64], index: 1, kind: input, shape index: {}]
  %s2 = inlined_call_operand.vmem [shape: f32[1,64], index: 2, kind: input, shape index: {}]
  %s3 = inlined_call_operand.vmem [shape: f32[8,64], index: 3, kind: output, shape index: {}]
  %s4 = sld [smem:[#allocation0]]
  $region22: #{encoder_forward.13} parent=0
    _
  %s6 = ssub.s32 1, %s4
  %s7 = scalar_select 0, %s6, %s4
  // Predicated region
  $region2: #{encoder_forward.13} parent=0 // pred_check
    _
  $region3: #{encoder_forward.13} parent=0 // pred_check_branch
    %9 = sbr.rel (0) target = $region5
  $region4: #{encoder_forward.13} parent=0 // pred_region
    _
  $region5: #{encoder_forward.13} parent=0 // pred_fallthru
    _
  // Predicated region
  $region6: #{encoder_forward.13} parent=0 // pred_check
    _
  $region7: #{encoder_forward.13} parent=0 // pred_check_branch
    %11 = sbr.rel (0) target = $region9
  $region8: #{encoder_forward.13} parent=0 // pred_region
    _
  $region9: #{encoder_forward.13} parent=0 // pred_fallthru
    _
  // Predicated region
  $region10: #{encoder_forward.13} parent=0 // pred_check
    _
  $region11: #{encoder_forward.13} parent=0 // pred_check_branch
    %13 = sbr.rel (0) target = $region13
  $region12: #{encoder_forward.13} parent=0 // pred_region
    _
  $region13: #{encoder_forward.13} parent=0 // pred_fallthru
    _
  %v14 = vld [vmem:[%s0] sm:$0xff]
  %v15 = vld [vmem:[%s1] sm:$0x1]
  %v17 = vperm.slane %v15, 0
  %v19 = vmul.f32 %v14, %v17
  %v20 = vld [vmem:[%s2] sm:$0x1]
  %v22 = vperm.slane %v20, 0
  %v24 = vadd.f32 %v19, %v22
  %vm25 = vcmp.ge.f32.partialorder %v24, 0.0
  %v26 = vmul.f32 %v24, 0.2
  %v27 = vsel %vm25, %v24, %v26
  %vm28 = vcmask 523264
  %29 = vst.msk [vmem:[%s3] sm:$0xff] %vm28, %v27
  // Predicated region
  $region14: #{encoder_forward.13} parent=0 // pred_check
    _
  $region15: #{encoder_forward.13} parent=0 // pred_check_branch
    %31 = sbr.rel (0) target = $region17
  $region16: #{encoder_forward.13} parent=0 // pred_region
    _
  $region17: #{encoder_forward.13} parent=0 // pred_fallthru
    _
  // Predicated region
  $region18: #{encoder_forward.13} parent=0 // pred_check
    _
  $region19: #{encoder_forward.13} parent=0 // pred_check_branch
    %33 = sbr.rel (0) target = $region21
  $region20: #{encoder_forward.13} parent=0 // pred_region
    _
  $region21: #{encoder_forward.13} parent=0 // pred_fallthru
    _

</llo_original>
